<compile_context>
chip_gen: v7x
topology: tpu7x:2x2x1
jax: 0.10.0
libtpu: 0.0.40
codegen_flags: <defaults>
</compile_context>

<pallas_src>
import jax
import jax.numpy as jnp
from jax import lax
from jax.experimental import pallas as pl
from jax.experimental.pallas import tpu as pltpu


def _round_up(x, m):
    return (x + m - 1) // m * m


# ----------------------------- Pallas kernels ------------------------------

def _conv_relu_pool_kernel(patches_ref, w_ref, b_ref, o_ref):
    """Fused conv + bias + ReLU + 2x2 maxpool on one lane tile.

    patches_ref : (4, Kp, tm) bf16  four pooling phases of the im2col matrix
    w_ref       : (Coutp, Kp) bf16
    b_ref       : (Coutp, 1)  f32
    o_ref       : (Coutp, tm) f32   pooled output, spatial dim in lanes

    Max over the four raw phase matmuls first, then bias + ReLU once:
    relu(max_i(y_i) + b) == max_i(relu(y_i + b)) since b is per-row and ReLU
    is monotone.
    """
    w = w_ref[...]
    acc = jnp.dot(w, patches_ref[0], preferred_element_type=jnp.float32)
    for i in range(1, 4):
        acc = jnp.maximum(
            acc, jnp.dot(w, patches_ref[i], preferred_element_type=jnp.float32))
    o_ref[...] = jnp.maximum(acc + b_ref[...], 0.0).astype(o_ref.dtype)


def _fc_head_kernel(x_ref, w1_ref, b1_ref, w2_ref, b2_ref, w3_ref, b3_ref,
                    o_ref):
    """fc3(relu(fc2(relu(fc1(x))))) with all intermediates kept in VMEM.

    All lane dims are padded to multiples of 128 by the wrapper so every
    matmul / store is lane-dense (no masked partial stores).
    """
    h = jnp.dot(x_ref[...], w1_ref[...], preferred_element_type=jnp.float32)
    h = jnp.maximum(h + b1_ref[...], 0.0)
    h = jnp.dot(h, w2_ref[...], preferred_element_type=jnp.float32)
    h = jnp.maximum(h + b2_ref[...], 0.0)
    out = jnp.dot(h, w3_ref[...], preferred_element_type=jnp.float32)
    o_ref[...] = (out + b3_ref[...]).astype(o_ref.dtype)


# ------------------------------ stage wrappers ------------------------------

def conv_relu_pool(x_cbhw, w_oihw, b, *, tile_m=1024):
    """maxpool2x2(relu(conv2d_valid(x, w) + b)).

    x_cbhw : (Cin, B, H, W)  channel-major activation (no relayout between
             conv stages).
    Returns (Cout, B, Hp, Wp) channel-major, f32.
    """
    Cin, B, H, W = x_cbhw.shape
    Cout, _, KH, KW = w_oihw.shape
    Ho, Wo = H - KH + 1, W - KW + 1
    Hp, Wp = Ho // 2, Wo // 2
    K, M = Cin * KH * KW, B * Hp * Wp
    Kp, Coutp = _round_up(K, 8), _round_up(Cout, 8)   # keep Kp at 8, not 128
    tm = min(tile_m, _round_up(M, 128))
    Mp = _round_up(M, tm)

    # Phase-split im2col (XLA glue; see TODO at top).  Channel-major input
    # means no transpose is needed: (Cin, KH*KW, B, Hp, Wp) reshapes straight
    # into (K, M) with K ordered (ci, ki, kj) to match w.reshape(Cout, K).
    x_bf = x_cbhw.astype(jnp.bfloat16)
    phases = []
    for dy in range(2):
        for dx in range(2):
            cols = [x_bf[:, :,
                         dy + ki: dy + ki + 2 * Hp - 1: 2,
                         dx + kj: dx + kj + 2 * Wp - 1: 2]
                    for ki in range(KH) for kj in range(KW)]
            pk = jnp.stack(cols, axis=1)               # (Cin, KH*KW, B, Hp, Wp)
            phases.append(pk.reshape(K, M))
    patches = jnp.stack(phases, axis=0)                # (4, K, M) bf16
    patches = jnp.pad(patches, ((0, 0), (0, Kp - K), (0, Mp - M)))

    wm = jnp.pad(w_oihw.reshape(Cout, K),
                 ((0, Coutp - Cout), (0, Kp - K))).astype(jnp.bfloat16)
    bm = jnp.pad(b, (0, Coutp - Cout)).reshape(Coutp, 1).astype(jnp.float32)

    out = pl.pallas_call(
        _conv_relu_pool_kernel,
        out_shape=jax.ShapeDtypeStruct((Coutp, Mp), jnp.float32),
        grid=(Mp // tm,),
        in_specs=[pl.BlockSpec((4, Kp, tm), lambda i: (0, 0, i)),
                  pl.BlockSpec((Coutp, Kp), lambda i: (0, 0)),
                  pl.BlockSpec((Coutp, 1), lambda i: (0, 0))],
        out_specs=pl.BlockSpec((Coutp, tm), lambda i: (0, i)),
        compiler_params=pltpu.CompilerParams(
            dimension_semantics=("parallel",)),
    )(patches, wm, bm)

    # Slice off padded rows/cols (padded M columns hold relu(bias) garbage).
    return out[:Cout, :M].reshape(Cout, B, Hp, Wp)


def fc_head(x, p, *, tile_b=256):
    """fc3(relu(fc2(relu(fc1(x))))) as a single pallas_call, tiled over rows.

    All feature dims zero-padded to multiples of 128 for lane-dense stores.
    """
    B, D = x.shape
    Dp = _round_up(D, 128)            # 400 -> 512
    H1, H2, OUT = 120, 84, 10
    H1p, H2p, OUTp = 128, 128, 128
    tb = min(tile_b, _round_up(B, 8))
    Bp = _round_up(B, tb)

    xp = jnp.pad(x, ((0, Bp - B), (0, Dp - D)))
    w1t = jnp.pad(p["fc1_w"].T, ((0, Dp - D), (0, H1p - H1)))
    w2t = jnp.pad(p["fc2_w"].T, ((0, H1p - H1), (0, H2p - H2)))
    w3t = jnp.pad(p["fc3_w"].T, ((0, H2p - H2), (0, OUTp - OUT)))
    b1 = jnp.pad(p["fc1_b"], (0, H1p - H1)).reshape(1, H1p)
    b2 = jnp.pad(p["fc2_b"], (0, H2p - H2)).reshape(1, H2p)
    b3 = jnp.pad(p["fc3_b"], (0, OUTp - OUT)).reshape(1, OUTp)

    out = pl.pallas_call(
        _fc_head_kernel,
        out_shape=jax.ShapeDtypeStruct((Bp, OUTp), jnp.float32),
        grid=(Bp // tb,),
        in_specs=[pl.BlockSpec((tb, Dp), lambda i: (i, 0)),
                  pl.BlockSpec(w1t.shape, lambda i: (0, 0)),
                  pl.BlockSpec(b1.shape, lambda i: (0, 0)),
                  pl.BlockSpec(w2t.shape, lambda i: (0, 0)),
                  pl.BlockSpec(b2.shape, lambda i: (0, 0)),
                  pl.BlockSpec(w3t.shape, lambda i: (0, 0)),
                  pl.BlockSpec(b3.shape, lambda i: (0, 0))],
        out_specs=pl.BlockSpec((tb, OUTp), lambda i: (i, 0)),
        compiler_params=pltpu.CompilerParams(
            dimension_semantics=("parallel",)),
    )(xp, w1t, b1, w2t, b2, w3t, b3)
    return out[:B, :OUT]


def net_forward(x_nchw, p):
    B = x_nchw.shape[0]
    x = jnp.transpose(x_nchw, (1, 0, 2, 3))                 # (3, B, 32, 32)
    y = conv_relu_pool(x, p["conv1_w"], p["conv1_b"])        # (6, B, 14, 14)
    y = conv_relu_pool(y, p["conv2_w"], p["conv2_b"])        # (16, B, 5, 5)
    # Single relayout to NCHW flatten order (matches torch .view(-1, 400)).
    flat = jnp.transpose(y, (1, 0, 2, 3)).reshape(B, 16 * 5 * 5)
    return fc_head(flat, p)


# ------------------------- deterministic parameters -------------------------

def init_params(key):
    def u(k, shape, fan_in):
        bound = 1.0 / (fan_in ** 0.5)
        return jax.random.uniform(k, shape, jnp.float32, -bound, bound)
    ks = jax.random.split(key, 10)
    return {
        "conv1_w": u(ks[0], (6, 3, 5, 5), 3 * 25),
        "conv1_b": u(ks[1], (6,), 3 * 25),
        "conv2_w": u(ks[2], (16, 6, 5, 5), 6 * 25),
        "conv2_b": u(ks[3], (16,), 6 * 25),
        "fc1_w":   u(ks[4], (120, 400), 400),
        "fc1_b":   u(ks[5], (120,), 400),
        "fc2_w":   u(ks[6], (84, 120), 120),
        "fc2_b":   u(ks[7], (84,), 120),
        "fc3_w":   u(ks[8], (10, 84), 84),
        "fc3_b":   u(ks[9], (10,), 84),
    }


# ----------------------------- pure-JAX reference ----------------------------

def net_reference(x, p):
    """Same forward as torch Net, with conv inputs/weights rounded to bf16 to
    match the kernel's bf16 conv operands (accumulation stays f32)."""
    dn = ("NCHW", "OIHW", "NCHW")

    def bf(z):
        return z.astype(jnp.bfloat16).astype(jnp.float32)

    def pool(z):
        return lax.reduce_window(z, -jnp.inf, lax.max,
                                 (1, 1, 2, 2), (1, 1, 2, 2), "VALID")

    y = lax.conv_general_dilated(bf(x), bf(p["conv1_w"]), (1, 1), "VALID",
                                 dimension_numbers=dn)
    y = pool(jnp.maximum(y + p["conv1_b"][None, :, None, None], 0.0))
    y = lax.conv_general_dilated(bf(y), bf(p["conv2_w"]), (1, 1), "VALID",
                                 dimension_numbers=dn)
    y = pool(jnp.maximum(y + p["conv2_b"][None, :, None, None], 0.0))
    y = y.reshape(y.shape[0], 16 * 5 * 5)
    y = jnp.maximum(y @ p["fc1_w"].T + p["fc1_b"], 0.0)
    y = jnp.maximum(y @ p["fc2_w"].T + p["fc2_b"], 0.0)
    return y @ p["fc3_w"].T + p["fc3_b"]


# ----------------------------------- main ------------------------------------

if __name__ == "__main__":
    key = jax.random.PRNGKey(0)
    pkey, xkey = jax.random.split(key)
    params = init_params(pkey)
    x = jax.random.normal(xkey, (2, 3, 32, 32), jnp.float32)   # CIFAR-sized

    out = jax.jit(net_forward)(x, params)
    out = jax.block_until_ready(out)

    ref = net_reference(x, params)
    assert out.shape == (2, 10), out.shape
    assert bool(jnp.all(jnp.isfinite(out)))
    assert bool(jnp.allclose(out, ref, atol=1e-2, rtol=1e-2)), (out, ref)
    print("KERNEL_OK")
</pallas_src>

<mosaic_0001>
module attributes {stable_mosaic.version = 11 : i64} {
  func.func @_conv_relu_pool_kernel(%arg0: i32, %arg1: memref<4x80x512xbf16, #tpu.memory_space<vmem>>, %arg2: memref<8x80xbf16, #tpu.memory_space<vmem>>, %arg3: memref<8x1xf32, #tpu.memory_space<vmem>>, %arg4: memref<8x512xf32, #tpu.memory_space<vmem>>) attributes {dimension_semantics = [#tpu.dimension_semantics<parallel>], iteration_bounds = array<i64: 1>, scalar_prefetch = 0 : i64, scratch_operands = 0 : i64, tpu.core_type = #tpu.core_type<tc>, window_params = [{transform_indices = @transform_0, window_bounds = array<i64: 4, 80, 512>}, {pipeline_mode = #tpu.pipeline_mode<synchronous>, transform_indices = @transform_1, window_bounds = array<i64: 8, 80>}, {pipeline_mode = #tpu.pipeline_mode<synchronous>, transform_indices = @transform_2, window_bounds = array<i64: 8, 1>}, {transform_indices = @transform_3, window_bounds = array<i64: 8, 512>}]} {
    %c0 = arith.constant 0 : index
    %c0_0 = arith.constant 0 : index
    %0 = vector.load %arg2[%c0, %c0_0] : memref<8x80xbf16, #tpu.memory_space<vmem>>, vector<8x80xbf16>
    %c0_1 = arith.constant 0 : index
    %c0_2 = arith.constant 0 : index
    %c0_3 = arith.constant 0 : index
    %1 = vector.load %arg1[%c0_1, %c0_2, %c0_3] : memref<4x80x512xbf16, #tpu.memory_space<vmem>>, vector<1x80x512xbf16>
    %2 = vector.shape_cast %1 : vector<1x80x512xbf16> to vector<80x512xbf16>
    %cst = arith.constant dense<0.000000e+00> : vector<8x512xf32>
    %3 = tpu.matmul %0, %2, %cst {dimension_numbers = #tpu.dot_dimension_numbers<[1], [0], [0], [1], [0, 0, 1, 1], [], []>} : vector<8x80xbf16>, vector<80x512xbf16>, vector<8x512xf32> -> vector<8x512xf32>
    %c1 = arith.constant 1 : index
    %c0_4 = arith.constant 0 : index
    %c0_5 = arith.constant 0 : index
    %4 = vector.load %arg1[%c1, %c0_4, %c0_5] : memref<4x80x512xbf16, #tpu.memory_space<vmem>>, vector<1x80x512xbf16>
    %5 = vector.shape_cast %4 : vector<1x80x512xbf16> to vector<80x512xbf16>
    %cst_6 = arith.constant dense<0.000000e+00> : vector<8x512xf32>
    %6 = tpu.matmul %0, %5, %cst_6 {dimension_numbers = #tpu.dot_dimension_numbers<[1], [0], [0], [1], [0, 0, 1, 1], [], []>} : vector<8x80xbf16>, vector<80x512xbf16>, vector<8x512xf32> -> vector<8x512xf32>
    %7 = arith.maximumf %3, %6 : vector<8x512xf32>
    %c2 = arith.constant 2 : index
    %c0_7 = arith.constant 0 : index
    %c0_8 = arith.constant 0 : index
    %8 = vector.load %arg1[%c2, %c0_7, %c0_8] : memref<4x80x512xbf16, #tpu.memory_space<vmem>>, vector<1x80x512xbf16>
    %9 = vector.shape_cast %8 : vector<1x80x512xbf16> to vector<80x512xbf16>
    %cst_9 = arith.constant dense<0.000000e+00> : vector<8x512xf32>
    %10 = tpu.matmul %0, %9, %cst_9 {dimension_numbers = #tpu.dot_dimension_numbers<[1], [0], [0], [1], [0, 0, 1, 1], [], []>} : vector<8x80xbf16>, vector<80x512xbf16>, vector<8x512xf32> -> vector<8x512xf32>
    %11 = arith.maximumf %7, %10 : vector<8x512xf32>
    %c3 = arith.constant 3 : index
    %c0_10 = arith.constant 0 : index
    %c0_11 = arith.constant 0 : index
    %12 = vector.load %arg1[%c3, %c0_10, %c0_11] : memref<4x80x512xbf16, #tpu.memory_space<vmem>>, vector<1x80x512xbf16>
    %13 = vector.shape_cast %12 : vector<1x80x512xbf16> to vector<80x512xbf16>
    %cst_12 = arith.constant dense<0.000000e+00> : vector<8x512xf32>
    %14 = tpu.matmul %0, %13, %cst_12 {dimension_numbers = #tpu.dot_dimension_numbers<[1], [0], [0], [1], [0, 0, 1, 1], [], []>} : vector<8x80xbf16>, vector<80x512xbf16>, vector<8x512xf32> -> vector<8x512xf32>
    %15 = arith.maximumf %11, %14 : vector<8x512xf32>
    %c0_13 = arith.constant 0 : index
    %c0_14 = arith.constant 0 : index
    %16 = vector.load %arg3[%c0_13, %c0_14] : memref<8x1xf32, #tpu.memory_space<vmem>>, vector<8x1xf32>
    %17 = vector.broadcast %16 : vector<8x1xf32> to vector<8x512xf32>
    %18 = arith.addf %15, %17 : vector<8x512xf32>
    %cst_15 = arith.constant 0.000000e+00 : f32
    %19 = vector.broadcast %cst_15 : f32 to vector<8x512xf32>
    %20 = arith.maximumf %18, %19 : vector<8x512xf32>
    %c0_16 = arith.constant 0 : index
    %c0_17 = arith.constant 0 : index
    %21 = vector.load %arg4[%c0_16, %c0_17] : memref<8x512xf32, #tpu.memory_space<vmem>>, vector<8x512xf32>
    tpu.vector_store %arg4[%c0_16, %c0_17], %20 {strides = array<i32>} : memref<8x512xf32, #tpu.memory_space<vmem>>, vector<8x512xf32>,
    return
  }
  func.func @transform_0(%arg0: i32) -> (i32, i32, i32) {
    %c0_i32 = arith.constant 0 : i32
    %c0_i32_0 = arith.constant 0 : i32
    %c0_i32_1 = arith.constant 0 : i32
    return %c0_i32, %c0_i32_0, %arg0 : i32, i32, i32
  }
  func.func @transform_1(%arg0: i32) -> (i32, i32) {
    %c0_i32 = arith.constant 0 : i32
    %c0_i32_0 = arith.constant 0 : i32
    %c0_i32_1 = arith.constant 0 : i32
    return %c0_i32, %c0_i32_0 : i32, i32
  }
  func.func @transform_2(%arg0: i32) -> (i32, i32) {
    %c0_i32 = arith.constant 0 : i32
    %c0_i32_0 = arith.constant 0 : i32
    %c0_i32_1 = arith.constant 0 : i32
    return %c0_i32, %c0_i32_0 : i32, i32
  }
  func.func @transform_3(%arg0: i32) -> (i32, i32) {
    %c0_i32 = arith.constant 0 : i32
    %c0_i32_0 = arith.constant 0 : i32
    return %c0_i32, %arg0 : i32, i32
  }
}

module attributes {stable_mosaic.version = 11 : i64} {
  func.func @_conv_relu_pool_kernel(%arg0: i32, %arg1: memref<4x152x128xbf16, #tpu.memory_space<vmem>>, %arg2: memref<16x152xbf16, #tpu.memory_space<vmem>>, %arg3: memref<16x1xf32, #tpu.memory_space<vmem>>, %arg4: memref<16x128xf32, #tpu.memory_space<vmem>>) attributes {dimension_semantics = [#tpu.dimension_semantics<parallel>], iteration_bounds = array<i64: 1>, scalar_prefetch = 0 : i64, scratch_operands = 0 : i64, tpu.core_type = #tpu.core_type<tc>, window_params = [{transform_indices = @transform_0, window_bounds = array<i64: 4, 152, 128>}, {pipeline_mode = #tpu.pipeline_mode<synchronous>, transform_indices = @transform_1, window_bounds = array<i64: 16, 152>}, {pipeline_mode = #tpu.pipeline_mode<synchronous>, transform_indices = @transform_2, window_bounds = array<i64: 16, 1>}, {transform_indices = @transform_3, window_bounds = array<i64: 16, 128>}]} {
    %c0 = arith.constant 0 : index
    %c0_0 = arith.constant 0 : index
    %0 = vector.load %arg2[%c0, %c0_0] : memref<16x152xbf16, #tpu.memory_space<vmem>>, vector<16x152xbf16>
    %c0_1 = arith.constant 0 : index
    %c0_2 = arith.constant 0 : index
    %c0_3 = arith.constant 0 : index
    %1 = vector.load %arg1[%c0_1, %c0_2, %c0_3] : memref<4x152x128xbf16, #tpu.memory_space<vmem>>, vector<1x152x128xbf16>
    %2 = vector.shape_cast %1 : vector<1x152x128xbf16> to vector<152x128xbf16>
    %cst = arith.constant dense<0.000000e+00> : vector<16x128xf32>
    %3 = tpu.matmul %0, %2, %cst {dimension_numbers = #tpu.dot_dimension_numbers<[1], [0], [0], [1], [0, 0, 1, 1], [], []>} : vector<16x152xbf16>, vector<152x128xbf16>, vector<16x128xf32> -> vector<16x128xf32>
    %c1 = arith.constant 1 : index
    %c0_4 = arith.constant 0 : index
    %c0_5 = arith.constant 0 : index
    %4 = vector.load %arg1[%c1, %c0_4, %c0_5] : memref<4x152x128xbf16, #tpu.memory_space<vmem>>, vector<1x152x128xbf16>
    %5 = vector.shape_cast %4 : vector<1x152x128xbf16> to vector<152x128xbf16>
    %cst_6 = arith.constant dense<0.000000e+00> : vector<16x128xf32>
    %6 = tpu.matmul %0, %5, %cst_6 {dimension_numbers = #tpu.dot_dimension_numbers<[1], [0], [0], [1], [0, 0, 1, 1], [], []>} : vector<16x152xbf16>, vector<152x128xbf16>, vector<16x128xf32> -> vector<16x128xf32>
    %7 = arith.maximumf %3, %6 : vector<16x128xf32>
    %c2 = arith.constant 2 : index
    %c0_7 = arith.constant 0 : index
    %c0_8 = arith.constant 0 : index
    %8 = vector.load %arg1[%c2, %c0_7, %c0_8] : memref<4x152x128xbf16, #tpu.memory_space<vmem>>, vector<1x152x128xbf16>
    %9 = vector.shape_cast %8 : vector<1x152x128xbf16> to vector<152x128xbf16>
    %cst_9 = arith.constant dense<0.000000e+00> : vector<16x128xf32>
    %10 = tpu.matmul %0, %9, %cst_9 {dimension_numbers = #tpu.dot_dimension_numbers<[1], [0], [0], [1], [0, 0, 1, 1], [], []>} : vector<16x152xbf16>, vector<152x128xbf16>, vector<16x128xf32> -> vector<16x128xf32>
    %11 = arith.maximumf %7, %10 : vector<16x128xf32>
    %c3 = arith.constant 3 : index
    %c0_10 = arith.constant 0 : index
    %c0_11 = arith.constant 0 : index
    %12 = vector.load %arg1[%c3, %c0_10, %c0_11] : memref<4x152x128xbf16, #tpu.memory_space<vmem>>, vector<1x152x128xbf16>
    %13 = vector.shape_cast %12 : vector<1x152x128xbf16> to vector<152x128xbf16>
    %cst_12 = arith.constant dense<0.000000e+00> : vector<16x128xf32>
    %14 = tpu.matmul %0, %13, %cst_12 {dimension_numbers = #tpu.dot_dimension_numbers<[1], [0], [0], [1], [0, 0, 1, 1], [], []>} : vector<16x152xbf16>, vector<152x128xbf16>, vector<16x128xf32> -> vector<16x128xf32>
    %15 = arith.maximumf %11, %14 : vector<16x128xf32>
    %c0_13 = arith.constant 0 : index
    %c0_14 = arith.constant 0 : index
    %16 = vector.load %arg3[%c0_13, %c0_14] : memref<16x1xf32, #tpu.memory_space<vmem>>, vector<16x1xf32>
    %17 = vector.broadcast %16 : vector<16x1xf32> to vector<16x128xf32>
    %18 = arith.addf %15, %17 : vector<16x128xf32>
    %cst_15 = arith.constant 0.000000e+00 : f32
    %19 = vector.broadcast %cst_15 : f32 to vector<16x128xf32>
    %20 = arith.maximumf %18, %19 : vector<16x128xf32>
    %c0_16 = arith.constant 0 : index
    %c0_17 = arith.constant 0 : index
    %21 = vector.load %arg4[%c0_16, %c0_17] : memref<16x128xf32, #tpu.memory_space<vmem>>, vector<16x128xf32>
    tpu.vector_store %arg4[%c0_16, %c0_17], %20 {strides = array<i32>} : memref<16x128xf32, #tpu.memory_space<vmem>>, vector<16x128xf32>,
    return
  }
  func.func @transform_0(%arg0: i32) -> (i32, i32, i32) {
    %c0_i32 = arith.constant 0 : i32
    %c0_i32_0 = arith.constant 0 : i32
    %c0_i32_1 = arith.constant 0 : i32
    return %c0_i32, %c0_i32_0, %arg0 : i32, i32, i32
  }
  func.func @transform_1(%arg0: i32) -> (i32, i32) {
    %c0_i32 = arith.constant 0 : i32
    %c0_i32_0 = arith.constant 0 : i32
    %c0_i32_1 = arith.constant 0 : i32
    return %c0_i32, %c0_i32_0 : i32, i32
  }
  func.func @transform_2(%arg0: i32) -> (i32, i32) {
    %c0_i32 = arith.constant 0 : i32
    %c0_i32_0 = arith.constant 0 : i32
    %c0_i32_1 = arith.constant 0 : i32
    return %c0_i32, %c0_i32_0 : i32, i32
  }
  func.func @transform_3(%arg0: i32) -> (i32, i32) {
    %c0_i32 = arith.constant 0 : i32
    %c0_i32_0 = arith.constant 0 : i32
    return %c0_i32, %arg0 : i32, i32
  }
}

module attributes {stable_mosaic.version = 11 : i64} {
  func.func @_fc_head_kernel(%arg0: i32, %arg1: memref<8x512xf32, #tpu.memory_space<vmem>>, %arg2: memref<512x128xf32, #tpu.memory_space<vmem>>, %arg3: memref<1x128xf32, #tpu.memory_space<vmem>>, %arg4: memref<128x128xf32, #tpu.memory_space<vmem>>, %arg5: memref<1x128xf32, #tpu.memory_space<vmem>>, %arg6: memref<128x128xf32, #tpu.memory_space<vmem>>, %arg7: memref<1x128xf32, #tpu.memory_space<vmem>>, %arg8: memref<8x128xf32, #tpu.memory_space<vmem>>) attributes {dimension_semantics = [#tpu.dimension_semantics<parallel>], iteration_bounds = array<i64: 1>, scalar_prefetch = 0 : i64, scratch_operands = 0 : i64, tpu.core_type = #tpu.core_type<tc>, window_params = [{transform_indices = @transform_0, window_bounds = array<i64: 8, 512>}, {pipeline_mode = #tpu.pipeline_mode<synchronous>, transform_indices = @transform_1, window_bounds = array<i64: 512, 128>}, {pipeline_mode = #tpu.pipeline_mode<synchronous>, transform_indices = @transform_2, window_bounds = array<i64: 1, 128>}, {pipeline_mode = #tpu.pipeline_mode<synchronous>, transform_indices = @transform_3, window_bounds = array<i64: 128, 128>}, {pipeline_mode = #tpu.pipeline_mode<synchronous>, transform_indices = @transform_4, window_bounds = array<i64: 1, 128>}, {pipeline_mode = #tpu.pipeline_mode<synchronous>, transform_indices = @transform_5, window_bounds = array<i64: 128, 128>}, {pipeline_mode = #tpu.pipeline_mode<synchronous>, transform_indices = @transform_6, window_bounds = array<i64: 1, 128>}, {transform_indices = @transform_7, window_bounds = array<i64: 8, 128>}]} {
    %c0 = arith.constant 0 : index
    %c0_0 = arith.constant 0 : index
    %0 = vector.load %arg1[%c0, %c0_0] : memref<8x512xf32, #tpu.memory_space<vmem>>, vector<8x512xf32>
    %c0_1 = arith.constant 0 : index
    %c0_2 = arith.constant 0 : index
    %1 = vector.load %arg2[%c0_1, %c0_2] : memref<512x128xf32, #tpu.memory_space<vmem>>, vector<512x128xf32>
    %cst = arith.constant dense<0.000000e+00> : vector<8x128xf32>
    %2 = tpu.matmul %0, %1, %cst {dimension_numbers = #tpu.dot_dimension_numbers<[1], [0], [0], [1], [0, 0, 1, 1], [], []>} : vector<8x512xf32>, vector<512x128xf32>, vector<8x128xf32> -> vector<8x128xf32>
    %c0_3 = arith.constant 0 : index
    %c0_4 = arith.constant 0 : index
    %3 = vector.load %arg3[%c0_3, %c0_4] : memref<1x128xf32, #tpu.memory_space<vmem>>, vector<1x128xf32>
    %4 = vector.broadcast %3 : vector<1x128xf32> to vector<8x128xf32>
    %5 = arith.addf %2, %4 : vector<8x128xf32>
    %cst_5 = arith.constant 0.000000e+00 : f32
    %6 = vector.broadcast %cst_5 : f32 to vector<8x128xf32>
    %7 = arith.maximumf %5, %6 : vector<8x128xf32>
    %c0_6 = arith.constant 0 : index
    %c0_7 = arith.constant 0 : index
    %8 = vector.load %arg4[%c0_6, %c0_7] : memref<128x128xf32, #tpu.memory_space<vmem>>, vector<128x128xf32>
    %cst_8 = arith.constant dense<0.000000e+00> : vector<8x128xf32>
    %9 = tpu.matmul %7, %8, %cst_8 {dimension_numbers = #tpu.dot_dimension_numbers<[1], [0], [0], [1], [0, 0, 1, 1], [], []>} : vector<8x128xf32>, vector<128x128xf32>, vector<8x128xf32> -> vector<8x128xf32>
    %c0_9 = arith.constant 0 : index
    %c0_10 = arith.constant 0 : index
    %10 = vector.load %arg5[%c0_9, %c0_10] : memref<1x128xf32, #tpu.memory_space<vmem>>, vector<1x128xf32>
    %11 = vector.broadcast %10 : vector<1x128xf32> to vector<8x128xf32>
    %12 = arith.addf %9, %11 : vector<8x128xf32>
    %cst_11 = arith.constant 0.000000e+00 : f32
    %13 = vector.broadcast %cst_11 : f32 to vector<8x128xf32>
    %14 = arith.maximumf %12, %13 : vector<8x128xf32>
    %c0_12 = arith.constant 0 : index
    %c0_13 = arith.constant 0 : index
    %15 = vector.load %arg6[%c0_12, %c0_13] : memref<128x128xf32, #tpu.memory_space<vmem>>, vector<128x128xf32>
    %cst_14 = arith.constant dense<0.000000e+00> : vector<8x128xf32>
    %16 = tpu.matmul %14, %15, %cst_14 {dimension_numbers = #tpu.dot_dimension_numbers<[1], [0], [0], [1], [0, 0, 1, 1], [], []>} : vector<8x128xf32>, vector<128x128xf32>, vector<8x128xf32> -> vector<8x128xf32>
    %c0_15 = arith.constant 0 : index
    %c0_16 = arith.constant 0 : index
    %17 = vector.load %arg7[%c0_15, %c0_16] : memref<1x128xf32, #tpu.memory_space<vmem>>, vector<1x128xf32>
    %18 = vector.broadcast %17 : vector<1x128xf32> to vector<8x128xf32>
    %19 = arith.addf %16, %18 : vector<8x128xf32>
    %c0_17 = arith.constant 0 : index
    %c0_18 = arith.constant 0 : index
    %20 = vector.load %arg8[%c0_17, %c0_18] : memref<8x128xf32, #tpu.memory_space<vmem>>, vector<8x128xf32>
    tpu.vector_store %arg8[%c0_17, %c0_18], %19 {strides = array<i32>} : memref<8x128xf32, #tpu.memory_space<vmem>>, vector<8x128xf32>,
    return
  }
  func.func @transform_0(%arg0: i32) -> (i32, i32) {
    %c0_i32 = arith.constant 0 : i32
    %c0_i32_0 = arith.constant 0 : i32
    return %arg0, %c0_i32 : i32, i32
  }
  func.func @transform_1(%arg0: i32) -> (i32, i32) {
    %c0_i32 = arith.constant 0 : i32
    %c0_i32_0 = arith.constant 0 : i32
    %c0_i32_1 = arith.constant 0 : i32
    return %c0_i32, %c0_i32_0 : i32, i32
  }
  func.func @transform_2(%arg0: i32) -> (i32, i32) {
    %c0_i32 = arith.constant 0 : i32
    %c0_i32_0 = arith.constant 0 : i32
    %c0_i32_1 = arith.constant 0 : i32
    return %c0_i32, %c0_i32_0 : i32, i32
  }
  func.func @transform_3(%arg0: i32) -> (i32, i32) {
    %c0_i32 = arith.constant 0 : i32
    %c0_i32_0 = arith.constant 0 : i32
    %c0_i32_1 = arith.constant 0 : i32
    return %c0_i32, %c0_i32_0 : i32, i32
  }
  func.func @transform_4(%arg0: i32) -> (i32, i32) {
    %c0_i32 = arith.constant 0 : i32
    %c0_i32_0 = arith.constant 0 : i32
    %c0_i32_1 = arith.constant 0 : i32
    return %c0_i32, %c0_i32_0 : i32, i32
  }
  func.func @transform_5(%arg0: i32) -> (i32, i32) {
    %c0_i32 = arith.constant 0 : i32
    %c0_i32_0 = arith.constant 0 : i32
    %c0_i32_1 = arith.constant 0 : i32
    return %c0_i32, %c0_i32_0 : i32, i32
  }
  func.func @transform_6(%arg0: i32) -> (i32, i32) {
    %c0_i32 = arith.constant 0 : i32
    %c0_i32_0 = arith.constant 0 : i32
    %c0_i32_1 = arith.constant 0 : i32
    return %c0_i32, %c0_i32_0 : i32, i32
  }
  func.func @transform_7(%arg0: i32) -> (i32, i32) {
    %c0_i32 = arith.constant 0 : i32
    %c0_i32_0 = arith.constant 0 : i32
    return %arg0, %c0_i32 : i32, i32
  }
}

</mosaic_0001>

<llo_original>
// kernel: net_forward.3
$region0: #{net_forward.3}
  #allocation0 [shape = 'u32[]', space=smem, size = 0x4, offset = 0x4, fixed_abs, tag = 'smem constant byte address 0x4 - core index']
  #allocation1 [shape = 'u32[144,128]{1,0:T(1,128)}', space=vmem, size = 0x12000, scoped, tag = 'internal scratch']
  %s0 = inlined_call_operand.vmem [shape: bf16[4,80,512], index: 0, kind: input, shape index: {}]
  %s1 = inlined_call_operand.vmem [shape: bf16[8,80], index: 1, kind: input, shape index: {}]
  %s2 = inlined_call_operand.vmem [shape: f32[8,1], index: 2, kind: input, shape index: {}]
  %s3 = inlined_call_operand.vmem [shape: f32[8,512], index: 3, kind: output, shape index: {}]
  %s4 = sld [smem:[#allocation0]]
  $region22: #{net_forward.3} parent=0
    _
  %s6 = ssub.s32 1, %s4
  %s7 = scalar_select 0, %s6, %s4
  // Predicated region
  $region2: #{net_forward.3} parent=0 // pred_check
    _
  $region3: #{net_forward.3} parent=0 // pred_check_branch
    %9 = sbr.rel (0) target = $region5
  $region4: #{net_forward.3} parent=0 // pred_region
    _
  $region5: #{net_forward.3} parent=0 // pred_fallthru
    _
  // Predicated region
  $region6: #{net_forward.3} parent=0 // pred_check
    _
  $region7: #{net_forward.3} parent=0 // pred_check_branch
    %11 = sbr.rel (0) target = $region9
  $region8: #{net_forward.3} parent=0 // pred_region
    _
  $region9: #{net_forward.3} parent=0 // pred_fallthru
    _
  // Predicated region
  $region10: #{net_forward.3} parent=0 // pred_check
    _
  $region11: #{net_forward.3} parent=0 // pred_check_branch
    %13 = sbr.rel (0) target = $region13
  $region12: #{net_forward.3} parent=0 // pred_region
    _
  $region13: #{net_forward.3} parent=0 // pred_fallthru
    _
  %v15 = vld [vmem:[%s1] sm:$0xf]
  %v16 = vld [vmem:[%s0] sm:$0xff]
  %v17 = vld [vmem:[%s0 + $0x8] sm:$0xff]
  %v18 = vld [vmem:[%s0 + $0x10] sm:$0xff]
  %v19 = vld [vmem:[%s0 + $0x18] sm:$0xff]
  %v20 = vld [vmem:[%s0 + $0x20] sm:$0xff]
  %v21 = vld [vmem:[%s0 + $0x28] sm:$0xff]
  %v22 = vld [vmem:[%s0 + $0x30] sm:$0xff]
  %v23 = vld [vmem:[%s0 + $0x38] sm:$0xff]
  %v24 = vld [vmem:[%s0 + $0x40] sm:$0xff]
  %v25 = vld [vmem:[%s0 + $0x48] sm:$0xff]
  %v26 = vld [vmem:[%s0 + $0x50] sm:$0xff]
  %v27 = vld [vmem:[%s0 + $0x58] sm:$0xff]
  %v28 = vld [vmem:[%s0 + $0x60] sm:$0xff]
  %v29 = vld [vmem:[%s0 + $0x68] sm:$0xff]
  %v30 = vld [vmem:[%s0 + $0x70] sm:$0xff]
  %v31 = vld [vmem:[%s0 + $0x78] sm:$0xff]
  %v32 = vld [vmem:[%s0 + $0x80] sm:$0xff]
  %v33 = vld [vmem:[%s0 + $0x88] sm:$0xff]
  %v34 = vld [vmem:[%s0 + $0x90] sm:$0xff]
  %v35 = vld [vmem:[%s0 + $0x98] sm:$0xff]
  %v56 = vunpack.c.l.b16 %v16
  %v57 = vunpack.c.h.b16 %v16
  %v58 = vunpack.c.l.b16 %v17
  %v59 = vunpack.c.h.b16 %v17
  %v60 = vunpack.c.l.b16 %v18
  %v61 = vunpack.c.h.b16 %v18
  %v62 = vunpack.c.l.b16 %v19
  %v63 = vunpack.c.h.b16 %v19
  %v64 = vunpack.c.l.b16 %v20
  %v65 = vunpack.c.h.b16 %v20
  %v66 = vunpack.c.l.b16 %v21
  %v67 = vunpack.c.h.b16 %v21
  %v68 = vunpack.c.l.b16 %v22
  %v69 = vunpack.c.h.b16 %v22
  %v70 = vunpack.c.l.b16 %v23
  %v71 = vunpack.c.h.b16 %v23
  %v72 = vunpack.c.l.b16 %v24
  %v73 = vunpack.c.h.b16 %v24
  %v74 = vunpack.c.l.b16 %v25
  %v75 = vunpack.c.h.b16 %v25
  %v76 = vunpack.c.l.b16 %v26
  %v77 = vunpack.c.h.b16 %v26
  %v78 = vunpack.c.l.b16 %v27
  %v79 = vunpack.c.h.b16 %v27
  %v80 = vunpack.c.l.b16 %v28
  %v81 = vunpack.c.h.b16 %v28
  %v82 = vunpack.c.l.b16 %v29
  %v83 = vunpack.c.h.b16 %v29
  %v84 = vunpack.c.l.b16 %v30
  %v85 = vunpack.c.h.b16 %v30
  %v86 = vunpack.c.l.b16 %v31
  %v87 = vunpack.c.h.b16 %v31
  %v88 = vunpack.c.l.b16 %v32
  %v89 = vunpack.c.h.b16 %v32
  %v90 = vunpack.c.l.b16 %v33
  %v91 = vunpack.c.h.b16 %v33
  %v92 = vunpack.c.l.b16 %v34
  %v93 = vunpack.c.h.b16 %v34
  %v94 = vunpack.c.l.b16 %v35
  %v95 = vunpack.c.h.b16 %v35
  %v96 = vpack.c.b16 %v60, %v56
  %v97 = vpack.c.b16 %v61, %v57
  %v98 = vpack.c.b16 %v62, %v58
  %v99 = vpack.c.b16 %v63, %v59
  %v100 = vpack.c.b16 %v68, %v64
  %v101 = vpack.c.b16 %v69, %v65
  %v102 = vpack.c.b16 %v70, %v66
  %v103 = vpack.c.b16 %v71, %v67
  %v104 = vpack.c.b16 %v76, %v72
  %v105 = vpack.c.b16 %v77, %v73
  %v106 = vpack.c.b16 %v78, %v74
  %v107 = vpack.c.b16 %v79, %v75
  %v108 = vpack.c.b16 %v84, %v80
  %v109 = vpack.c.b16 %v85, %v81
  %v110 = vpack.c.b16 %v86, %v82
  %v111 = vpack.c.b16 %v87, %v83
  %v112 = vpack.c.b16 %v92, %v88
  %v113 = vpack.c.b16 %v93, %v89
  %v114 = vpack.c.b16 %v94, %v90
  %v115 = vpack.c.b16 %v95, %v91
  %vm136 = vcmask 654336
  %v138 = vsel %vm136, %v15, 0
  %140 = vmatprep.subr.bf16.mxu0 %v97
  %141 = vmatpush1.bf16.msra.mxu0 %v96
  %142 = vmatprep.subr.bf16.mxu0 %v101
  %143 = vmatpush1.bf16.msra.mxu0 %v100
  %144 = vmatprep.subr.bf16.mxu0 %v105
  %145 = vmatpush1.bf16.msra.mxu0 %v104
  %146 = vmatprep.subr.bf16.mxu0 %v109
  %147 = vmatpush1.bf16.msra.mxu0 %v108
  %148 = vmatprep.subr.bf16.mxu0 %v113
  %149 = vmatpush1.bf16.msra.mxu0 %v112
  %150 = vmatprep.subr.bf16.mxu0 0
  %151 = vmatpush1.bf16.msra.mxu0 0
  %152 = vmatprep.subr.bf16.mxu0 0
  %153 = vmatpush1.bf16.msra.mxu0 0
  %154 = vmatprep.subr.bf16.mxu0 0
  %155 = vmatpush1.bf16.msra.mxu0 0
  %156 = vmatprep.subr.bf16.mxu0 0
  %157 = vmatpush1.bf16.msra.mxu0 0
  %158 = vmatprep.subr.bf16.mxu0 0
  %159 = vmatpush1.bf16.msra.mxu0 0
  %160 = vmatprep.subr.bf16.mxu0 0
  %161 = vmatpush1.bf16.msra.mxu0 0
  %162 = vmatprep.subr.bf16.mxu0 0
  %163 = vmatpush1.bf16.msra.mxu0 0
  %164 = vmatprep.subr.bf16.mxu0 0
  %165 = vmatpush1.bf16.msra.mxu0 0
  %166 = vmatprep.subr.bf16.mxu0 0
  %167 = vmatpush1.bf16.msra.mxu0 0
  %168 = vmatprep.subr.bf16.mxu0 0
  %169 = vmatpush1.bf16.msra.mxu0 0
  %170 = vmatprep.subr.bf16.mxu0 0
  %171 = vmatpush1.bf16.msra.mxu0 0
  %172 = vmatprep.mubr.bf16.mxu0 0
  %173 = vmatmul.mubr.bf16.gmra.mrb[0].mxu0 %v138
  %v174 = vpop.f32.mrb[0].mxu0
  %v175 = vadd.f32 0.0, %v174
  %v176 = vpop.f32.mrb[0].mxu0
  %v177 = vadd.f32 0.0, %v176
  %v178 = vpop.f32.mrb[0].mxu0
  %v179 = vpop.f32.mrb[0].mxu0
  %180 = vdwg.mxu0
  %181 = vmatprep.subr.bf16.mxu0 %v99
  %182 = vmatpush1.bf16.msra.mxu0 %v98
  %183 = vmatprep.subr.bf16.mxu0 %v103
  %184 = vmatpush1.bf16.msra.mxu0 %v102
  %185 = vmatprep.subr.bf16.mxu0 %v107
  %186 = vmatpush1.bf16.msra.mxu0 %v106
  %187 = vmatprep.subr.bf16.mxu0 %v111
  %188 = vmatpush1.bf16.msra.mxu0 %v110
  %189 = vmatprep.subr.bf16.mxu0 %v115
  %190 = vmatpush1.bf16.msra.mxu0 %v114
  %191 = vmatprep.subr.bf16.mxu0 0
  %192 = vmatpush1.bf16.msra.mxu0 0
  %193 = vmatprep.subr.bf16.mxu0 0
  %194 = vmatpush1.bf16.msra.mxu0 0
  %195 = vmatprep.subr.bf16.mxu0 0
  %196 = vmatpush1.bf16.msra.mxu0 0
  %197 = vmatprep.subr.bf16.mxu0 0
  %198 = vmatpush1.bf16.msra.mxu0 0
  %199 = vmatprep.subr.bf16.mxu0 0
  %200 = vmatpush1.bf16.msra.mxu0 0
  %201 = vmatprep.subr.bf16.mxu0 0
  %202 = vmatpush1.bf16.msra.mxu0 0
  %203 = vmatprep.subr.bf16.mxu0 0
  %204 = vmatpush1.bf16.msra.mxu0 0
  %205 = vmatprep.subr.bf16.mxu0 0
  %206 = vmatpush1.bf16.msra.mxu0 0
  %207 = vmatprep.subr.bf16.mxu0 0
  %208 = vmatpush1.bf16.msra.mxu0 0
  %209 = vmatprep.subr.bf16.mxu0 0
  %210 = vmatpush1.bf16.msra.mxu0 0
  %211 = vmatprep.subr.bf16.mxu0 0
  %212 = vmatpush1.bf16.msra.mxu0 0
  %213 = vmatprep.mubr.bf16.mxu0 0
  %214 = vmatmul.mubr.bf16.gmra.mrb[0].mxu0 %v138
  %v215 = vpop.f32.mrb[0].mxu0
  %v216 = vadd.f32 0.0, %v215
  %v217 = vpop.f32.mrb[0].mxu0
  %v218 = vadd.f32 0.0, %v217
  %v219 = vpop.f32.mrb[0].mxu0
  %v220 = vpop.f32.mrb[0].mxu0
  %221 = vdwg.mxu0
  %s222 = scalar_lea.vmem %s0, 160
  %v223 = vld [vmem:[%s222] sm:$0xff]
  %v224 = vld [vmem:[%s222 + $0x8] sm:$0xff]
  %v225 = vld [vmem:[%s222 + $0x10] sm:$0xff]
  %v226 = vld [vmem:[%s222 + $0x18] sm:$0xff]
  %v227 = vld [vmem:[%s222 + $0x20] sm:$0xff]
  %v228 = vld [vmem:[%s222 + $0x28] sm:$0xff]
  %v229 = vld [vmem:[%s222 + $0x30] sm:$0xff]
  %v230 = vld [vmem:[%s222 + $0x38] sm:$0xff]
  %v231 = vld [vmem:[%s222 + $0x40] sm:$0xff]
  %v232 = vld [vmem:[%s222 + $0x48] sm:$0xff]
  %v233 = vld [vmem:[%s222 + $0x50] sm:$0xff]
  %v234 = vld [vmem:[%s222 + $0x58] sm:$0xff]
  %v235 = vld [vmem:[%s222 + $0x60] sm:$0xff]
  %v236 = vld [vmem:[%s222 + $0x68] sm:$0xff]
  %v237 = vld [vmem:[%s222 + $0x70] sm:$0xff]
  %v238 = vld [vmem:[%s222 + $0x78] sm:$0xff]
  %v239 = vld [vmem:[%s222 + $0x80] sm:$0xff]
  %v240 = vld [vmem:[%s222 + $0x88] sm:$0xff]
  %v241 = vld [vmem:[%s222 + $0x90] sm:$0xff]
  %v242 = vld [vmem:[%s222 + $0x98] sm:$0xff]
  %v263 = vunpack.c.l.b16 %v223
  %v264 = vunpack.c.h.b16 %v223
  %v265 = vunpack.c.l.b16 %v224
  %v266 = vunpack.c.h.b16 %v224
  %v267 = vunpack.c.l.b16 %v225
  %v268 = vunpack.c.h.b16 %v225
  %v269 = vunpack.c.l.b16 %v226
  %v270 = vunpack.c.h.b16 %v226
  %v271 = vunpack.c.l.b16 %v227
  %v272 = vunpack.c.h.b16 %v227
  %v273 = vunpack.c.l.b16 %v228
  %v274 = vunpack.c.h.b16 %v228
  %v275 = vunpack.c.l.b16 %v229
  %v276 = vunpack.c.h.b16 %v229
  %v277 = vunpack.c.l.b16 %v230
  %v278 = vunpack.c.h.b16 %v230
  %v279 = vunpack.c.l.b16 %v231
  %v280 = vunpack.c.h.b16 %v231
  %v281 = vunpack.c.l.b16 %v232
  %v282 = vunpack.c.h.b16 %v232
  %v283 = vunpack.c.l.b16 %v233
  %v284 = vunpack.c.h.b16 %v233
  %v285 = vunpack.c.l.b16 %v234
  %v286 = vunpack.c.h.b16 %v234
  %v287 = vunpack.c.l.b16 %v235
  %v288 = vunpack.c.h.b16 %v235
  %v289 = vunpack.c.l.b16 %v236
  %v290 = vunpack.c.h.b16 %v236
  %v291 = vunpack.c.l.b16 %v237
  %v292 = vunpack.c.h.b16 %v237
  %v293 = vunpack.c.l.b16 %v238
  %v294 = vunpack.c.h.b16 %v238
  %v295 = vunpack.c.l.b16 %v239
  %v296 = vunpack.c.h.b16 %v239
  %v297 = vunpack.c.l.b16 %v240
  %v298 = vunpack.c.h.b16 %v240
  %v299 = vunpack.c.l.b16 %v241
  %v300 = vunpack.c.h.b16 %v241
  %v301 = vunpack.c.l.b16 %v242
  %v302 = vunpack.c.h.b16 %v242
  %v303 = vpack.c.b16 %v267, %v263
  %v304 = vpack.c.b16 %v268, %v264
  %v305 = vpack.c.b16 %v269, %v265
  %v306 = vpack.c.b16 %v270, %v266
  %v307 = vpack.c.b16 %v275, %v271
  %v308 = vpack.c.b16 %v276, %v272
  %v309 = vpack.c.b16 %v277, %v273
  %v310 = vpack.c.b16 %v278, %v274
  %v311 = vpack.c.b16 %v283, %v279
  %v312 = vpack.c.b16 %v284, %v280
  %v313 = vpack.c.b16 %v285, %v281
  %v314 = vpack.c.b16 %v286, %v282
  %v315 = vpack.c.b16 %v291, %v287
  %v316 = vpack.c.b16 %v292, %v288
  %v317 = vpack.c.b16 %v293, %v289
  %v318 = vpack.c.b16 %v294, %v290
  %v319 = vpack.c.b16 %v299, %v295
  %v320 = vpack.c.b16 %v300, %v296
  %v321 = vpack.c.b16 %v301, %v297
  %v322 = vpack.c.b16 %v302, %v298
  %343 = vmatprep.subr.bf16.mxu0 %v304
  %344 = vmatpush1.bf16.msra.mxu0 %v303
  %345 = vmatprep.subr.bf16.mxu0 %v308
  %346 = vmatpush1.bf16.msra.mxu0 %v307
  %347 = vmatprep.subr.bf16.mxu0 %v312
  %348 = vmatpush1.bf16.msra.mxu0 %v311
  %349 = vmatprep.subr.bf16.mxu0 %v316
  %350 = vmatpush1.bf16.msra.mxu0 %v315
  %351 = vmatprep.subr.bf16.mxu0 %v320
  %352 = vmatpush1.bf16.msra.mxu0 %v319
  %353 = vmatprep.subr.bf16.mxu0 0
  %354 = vmatpush1.bf16.msra.mxu0 0
  %355 = vmatprep.subr.bf16.mxu0 0
  %356 = vmatpush1.bf16.msra.mxu0 0
  %357 = vmatprep.subr.bf16.mxu0 0
  %358 = vmatpush1.bf16.msra.mxu0 0
  %359 = vmatprep.subr.bf16.mxu0 0
  %360 = vmatpush1.bf16.msra.mxu0 0
  %361 = vmatprep.subr.bf16.mxu0 0
  %362 = vmatpush1.bf16.msra.mxu0 0
  %363 = vmatprep.subr.bf16.mxu0 0
  %364 = vmatpush1.bf16.msra.mxu0 0
  %365 = vmatprep.subr.bf16.mxu0 0
  %366 = vmatpush1.bf16.msra.mxu0 0
  %367 = vmatprep.subr.bf16.mxu0 0
  %368 = vmatpush1.bf16.msra.mxu0 0
  %369 = vmatprep.subr.bf16.mxu0 0
  %370 = vmatpush1.bf16.msra.mxu0 0
  %371 = vmatprep.subr.bf16.mxu0 0
  %372 = vmatpush1.bf16.msra.mxu0 0
  %373 = vmatprep.subr.bf16.mxu0 0
  %374 = vmatpush1.bf16.msra.mxu0 0
  %375 = vmatprep.mubr.bf16.mxu0 0
  %376 = vmatmul.mubr.bf16.gmra.mrb[0].mxu0 %v138
  %v377 = vpop.f32.mrb[0].mxu0
  %v378 = vadd.f32 0.0, %v377
  %v379 = vpop.f32.mrb[0].mxu0
  %v380 = vadd.f32 0.0, %v379
  %v381 = vpop.f32.mrb[0].mxu0
  %v382 = vpop.f32.mrb[0].mxu0
  %383 = vdwg.mxu0
  %384 = vmatprep.subr.bf16.mxu0 %v306
  %385 = vmatpush1.bf16.msra.mxu0 %v305
  %386 = vmatprep.subr.bf16.mxu0 %v310
  %387 = vmatpush1.bf16.msra.mxu0 %v309
  %388 = vmatprep.subr.bf16.mxu0 %v314
  %389 = vmatpush1.bf16.msra.mxu0 %v313
  %390 = vmatprep.subr.bf16.mxu0 %v318
  %391 = vmatpush1.bf16.msra.mxu0 %v317
  %392 = vmatprep.subr.bf16.mxu0 %v322
  %393 = vmatpush1.bf16.msra.mxu0 %v321
  %394 = vmatprep.subr.bf16.mxu0 0
  %395 = vmatpush1.bf16.msra.mxu0 0
  %396 = vmatprep.subr.bf16.mxu0 0
  %397 = vmatpush1.bf16.msra.mxu0 0
  %398 = vmatprep.subr.bf16.mxu0 0
  %399 = vmatpush1.bf16.msra.mxu0 0
  %400 = vmatprep.subr.bf16.mxu0 0
  %401 = vmatpush1.bf16.msra.mxu0 0
  %402 = vmatprep.subr.bf16.mxu0 0
  %403 = vmatpush1.bf16.msra.mxu0 0
  %404 = vmatprep.subr.bf16.mxu0 0
  %405 = vmatpush1.bf16.msra.mxu0 0
  %406 = vmatprep.subr.bf16.mxu0 0
  %407 = vmatpush1.bf16.msra.mxu0 0
  %408 = vmatprep.subr.bf16.mxu0 0
  %409 = vmatpush1.bf16.msra.mxu0 0
  %410 = vmatprep.subr.bf16.mxu0 0
  %411 = vmatpush1.bf16.msra.mxu0 0
  %412 = vmatprep.subr.bf16.mxu0 0
  %413 = vmatpush1.bf16.msra.mxu0 0
  %414 = vmatprep.subr.bf16.mxu0 0
  %415 = vmatpush1.bf16.msra.mxu0 0
  %416 = vmatprep.mubr.bf16.mxu0 0
  %417 = vmatmul.mubr.bf16.gmra.mrb[0].mxu0 %v138
  %v418 = vpop.f32.mrb[0].mxu0
  %v419 = vadd.f32 0.0, %v418
  %v420 = vpop.f32.mrb[0].mxu0
  %v421 = vadd.f32 0.0, %v420
  %v422 = vpop.f32.mrb[0].mxu0
  %v423 = vpop.f32.mrb[0].mxu0
  %424 = vdwg.mxu0
  %v425 = vmax.f32 %v175, %v378
  %v426 = vmax.f32 %v177, %v380
  %v427 = vmax.f32 %v216, %v419
  %v428 = vmax.f32 %v218, %v421
  %s429 = scalar_lea.vmem %s0, 320
  %v430 = vld [vmem:[%s429] sm:$0xff]
  %v431 = vld [vmem:[%s429 + $0x8] sm:$0xff]
  %v432 = vld [vmem:[%s429 + $0x10] sm:$0xff]
  %v433 = vld [vmem:[%s429 + $0x18] sm:$0xff]
  %v434 = vld [vmem:[%s429 + $0x20] sm:$0xff]
  %v435 = vld [vmem:[%s429 + $0x28] sm:$0xff]
  %v436 = vld [vmem:[%s429 + $0x30] sm:$0xff]
  %v437 = vld [vmem:[%s429 + $0x38] sm:$0xff]
  %v438 = vld [vmem:[%s429 + $0x40] sm:$0xff]
  %v439 = vld [vmem:[%s429 + $0x48] sm:$0xff]
  %v440 = vld [vmem:[%s429 + $0x50] sm:$0xff]
  %v441 = vld [vmem:[%s429 + $0x58] sm:$0xff]
  %v442 = vld [vmem:[%s429 + $0x60] sm:$0xff]
  %v443 = vld [vmem:[%s429 + $0x68] sm:$0xff]
  %v444 = vld [vmem:[%s429 + $0x70] sm:$0xff]
  %v445 = vld [vmem:[%s429 + $0x78] sm:$0xff]
  %v446 = vld [vmem:[%s429 + $0x80] sm:$0xff]
  %v447 = vld [vmem:[%s429 + $0x88] sm:$0xff]
  %v448 = vld [vmem:[%s429 + $0x90] sm:$0xff]
  %v449 = vld [vmem:[%s429 + $0x98] sm:$0xff]
  %v470 = vunpack.c.l.b16 %v430
  %v471 = vunpack.c.h.b16 %v430
  %v472 = vunpack.c.l.b16 %v431
  %v473 = vunpack.c.h.b16 %v431
  %v474 = vunpack.c.l.b16 %v432
  %v475 = vunpack.c.h.b16 %v432
  %v476 = vunpack.c.l.b16 %v433
  %v477 = vunpack.c.h.b16 %v433
  %v478 = vunpack.c.l.b16 %v434
  %v479 = vunpack.c.h.b16 %v434
  %v480 = vunpack.c.l.b16 %v435
  %v481 = vunpack.c.h.b16 %v435
  %v482 = vunpack.c.l.b16 %v436
  %v483 = vunpack.c.h.b16 %v436
  %v484 = vunpack.c.l.b16 %v437
  %v485 = vunpack.c.h.b16 %v437
  %v486 = vunpack.c.l.b16 %v438
  %v487 = vunpack.c.h.b16 %v438
  %v488 = vunpack.c.l.b16 %v439
  %v489 = vunpack.c.h.b16 %v439
  %v490 = vunpack.c.l.b16 %v440
  %v491 = vunpack.c.h.b16 %v440
  %v492 = vunpack.c.l.b16 %v441
  %v493 = vunpack.c.h.b16 %v441
  %v494 = vunpack.c.l.b16 %v442
  %v495 = vunpack.c.h.b16 %v442
  %v496 = vunpack.c.l.b16 %v443
  %v497 = vunpack.c.h.b16 %v443
  %v498 = vunpack.c.l.b16 %v444
  %v499 = vunpack.c.h.b16 %v444
  %v500 = vunpack.c.l.b16 %v445
  %v501 = vunpack.c.h.b16 %v445
  %v502 = vunpack.c.l.b16 %v446
  %v503 = vunpack.c.h.b16 %v446
  %v504 = vunpack.c.l.b16 %v447
  %v505 = vunpack.c.h.b16 %v447
  %v506 = vunpack.c.l.b16 %v448
  %v507 = vunpack.c.h.b16 %v448
  %v508 = vunpack.c.l.b16 %v449
  %v509 = vunpack.c.h.b16 %v449
  %v510 = vpack.c.b16 %v474, %v470
  %v511 = vpack.c.b16 %v475, %v471
  %v512 = vpack.c.b16 %v476, %v472
  %v513 = vpack.c.b16 %v477, %v473
  %v514 = vpack.c.b16 %v482, %v478
  %v515 = vpack.c.b16 %v483, %v479
  %v516 = vpack.c.b16 %v484, %v480
  %v517 = vpack.c.b16 %v485, %v481
  %v518 = vpack.c.b16 %v490, %v486
  %v519 = vpack.c.b16 %v491, %v487
  %v520 = vpack.c.b16 %v492, %v488
  %v521 = vpack.c.b16 %v493, %v489
  %v522 = vpack.c.b16 %v498, %v494
  %v523 = vpack.c.b16 %v499, %v495
  %v524 = vpack.c.b16 %v500, %v496
  %v525 = vpack.c.b16 %v501, %v497
  %v526 = vpack.c.b16 %v506, %v502
  %v527 = vpack.c.b16 %v507, %v503
  %v528 = vpack.c.b16 %v508, %v504
  %v529 = vpack.c.b16 %v509, %v505
  %550 = vmatprep.subr.bf16.mxu0 %v511
  %551 = vmatpush1.bf16.msra.mxu0 %v510
  %552 = vmatprep.subr.bf16.mxu0 %v515
  %553 = vmatpush1.bf16.msra.mxu0 %v514
  %554 = vmatprep.subr.bf16.mxu0 %v519
  %555 = vmatpush1.bf16.msra.mxu0 %v518
  %556 = vmatprep.subr.bf16.mxu0 %v523
  %557 = vmatpush1.bf16.msra.mxu0 %v522
  %558 = vmatprep.subr.bf16.mxu0 %v527
  %559 = vmatpush1.bf16.msra.mxu0 %v526
  %560 = vmatprep.subr.bf16.mxu0 0
  %561 = vmatpush1.bf16.msra.mxu0 0
  %562 = vmatprep.subr.bf16.mxu0 0
  %563 = vmatpush1.bf16.msra.mxu0 0
  %564 = vmatprep.subr.bf16.mxu0 0
  %565 = vmatpush1.bf16.msra.mxu0 0
  %566 = vmatprep.subr.bf16.mxu0 0
  %567 = vmatpush1.bf16.msra.mxu0 0
  %568 = vmatprep.subr.bf16.mxu0 0
  %569 = vmatpush1.bf16.msra.mxu0 0
  %570 = vmatprep.subr.bf16.mxu0 0
  %571 = vmatpush1.bf16.msra.mxu0 0
  %572 = vmatprep.subr.bf16.mxu0 0
  %573 = vmatpush1.bf16.msra.mxu0 0
  %574 = vmatprep.subr.bf16.mxu0 0
  %575 = vmatpush1.bf16.msra.mxu0 0
  %576 = vmatprep.subr.bf16.mxu0 0
  %577 = vmatpush1.bf16.msra.mxu0 0
  %578 = vmatprep.subr.bf16.mxu0 0
  %579 = vmatpush1.bf16.msra.mxu0 0
  %580 = vmatprep.subr.bf16.mxu0 0
  %581 = vmatpush1.bf16.msra.mxu0 0
  %582 = vmatprep.mubr.bf16.mxu0 0
  %583 = vmatmul.mubr.bf16.gmra.mrb[0].mxu0 %v138
  %v584 = vpop.f32.mrb[0].mxu0
  %v585 = vadd.f32 0.0, %v584
  %v586 = vpop.f32.mrb[0].mxu0
  %v587 = vadd.f32 0.0, %v586
  %v588 = vpop.f32.mrb[0].mxu0
  %v589 = vpop.f32.mrb[0].mxu0
  %590 = vdwg.mxu0
  %591 = vmatprep.subr.bf16.mxu0 %v513
  %592 = vmatpush1.bf16.msra.mxu0 %v512
  %593 = vmatprep.subr.bf16.mxu0 %v517
  %594 = vmatpush1.bf16.msra.mxu0 %v516
  %595 = vmatprep.subr.bf16.mxu0 %v521
  %596 = vmatpush1.bf16.msra.mxu0 %v520
  %597 = vmatprep.subr.bf16.mxu0 %v525
  %598 = vmatpush1.bf16.msra.mxu0 %v524
  %599 = vmatprep.subr.bf16.mxu0 %v529
  %600 = vmatpush1.bf16.msra.mxu0 %v528
  %601 = vmatprep.subr.bf16.mxu0 0
  %602 = vmatpush1.bf16.msra.mxu0 0
  %603 = vmatprep.subr.bf16.mxu0 0
  %604 = vmatpush1.bf16.msra.mxu0 0
  %605 = vmatprep.subr.bf16.mxu0 0
  %606 = vmatpush1.bf16.msra.mxu0 0
  %607 = vmatprep.subr.bf16.mxu0 0
  %608 = vmatpush1.bf16.msra.mxu0 0
  %609 = vmatprep.subr.bf16.mxu0 0
  %610 = vmatpush1.bf16.msra.mxu0 0
  %611 = vmatprep.subr.bf16.mxu0 0
  %612 = vmatpush1.bf16.msra.mxu0 0
  %613 = vmatprep.subr.bf16.mxu0 0
  %614 = vmatpush1.bf16.msra.mxu0 0
  %615 = vmatprep.subr.bf16.mxu0 0
  %616 = vmatpush1.bf16.msra.mxu0 0
  %617 = vmatprep.subr.bf16.mxu0 0
  %618 = vmatpush1.bf16.msra.mxu0 0
  %619 = vmatprep.subr.bf16.mxu0 0
  %620 = vmatpush1.bf16.msra.mxu0 0
  %621 = vmatprep.subr.bf16.mxu0 0
  %622 = vmatpush1.bf16.msra.mxu0 0
  %623 = vmatprep.mubr.bf16.mxu0 0
  %624 = vmatmul.mubr.bf16.gmra.mrb[0].mxu0 %v138
  %v625 = vpop.f32.mrb[0].mxu0
  %v626 = vadd.f32 0.0, %v625
  %v627 = vpop.f32.mrb[0].mxu0
  %v628 = vadd.f32 0.0, %v627
  %v629 = vpop.f32.mrb[0].mxu0
  %v630 = vpop.f32.mrb[0].mxu0
  %631 = vdwg.mxu0
  %v632 = vmax.f32 %v425, %v585
  %v633 = vmax.f32 %v426, %v587
  %v634 = vmax.f32 %v427, %v626
  %v635 = vmax.f32 %v428, %v628
  %s636 = scalar_lea.vmem %s0, 480
  %v637 = vld [vmem:[%s636] sm:$0xff]
  %v638 = vld [vmem:[%s636 + $0x8] sm:$0xff]
  %v639 = vld [vmem:[%s636 + $0x10] sm:$0xff]
  %v640 = vld [vmem:[%s636 + $0x18] sm:$0xff]
  %v641 = vld [vmem:[%s636 + $0x20] sm:$0xff]
  %v642 = vld [vmem:[%s636 + $0x28] sm:$0xff]
  %v643 = vld [vmem:[%s636 + $0x30] sm:$0xff]
  %v644 = vld [vmem:[%s636 + $0x38] sm:$0xff]
  %v645 = vld [vmem:[%s636 + $0x40] sm:$0xff]
  %v646 = vld [vmem:[%s636 + $0x48] sm:$0xff]
  %v647 = vld [vmem:[%s636 + $0x50] sm:$0xff]
  %v648 = vld [vmem:[%s636 + $0x58] sm:$0xff]
  %v649 = vld [vmem:[%s636 + $0x60] sm:$0xff]
  %v650 = vld [vmem:[%s636 + $0x68] sm:$0xff]
  %v651 = vld [vmem:[%s636 + $0x70] sm:$0xff]
  %v652 = vld [vmem:[%s636 + $0x78] sm:$0xff]
  %v653 = vld [vmem:[%s636 + $0x80] sm:$0xff]
  %v654 = vld [vmem:[%s636 + $0x88] sm:$0xff]
  %v655 = vld [vmem:[%s636 + $0x90] sm:$0xff]
  %v656 = vld [vmem:[%s636 + $0x98] sm:$0xff]
  %v677 = vunpack.c.l.b16 %v637
  %v678 = vunpack.c.h.b16 %v637
  %v679 = vunpack.c.l.b16 %v638
  %v680 = vunpack.c.h.b16 %v638
  %v681 = vunpack.c.l.b16 %v639
  %v682 = vunpack.c.h.b16 %v639
  %v683 = vunpack.c.l.b16 %v640
  %v684 = vunpack.c.h.b16 %v640
  %v685 = vunpack.c.l.b16 %v641
  %v686 = vunpack.c.h.b16 %v641
  %v687 = vunpack.c.l.b16 %v642
  %v688 = vunpack.c.h.b16 %v642
  %v689 = vunpack.c.l.b16 %v643
  %v690 = vunpack.c.h.b16 %v643
  %v691 = vunpack.c.l.b16 %v644
  %v692 = vunpack.c.h.b16 %v644
  %v693 = vunpack.c.l.b16 %v645
  %v694 = vunpack.c.h.b16 %v645
  %v695 = vunpack.c.l.b16 %v646
  %v696 = vunpack.c.h.b16 %v646
  %v697 = vunpack.c.l.b16 %v647
  %v698 = vunpack.c.h.b16 %v647
  %v699 = vunpack.c.l.b16 %v648
  %v700 = vunpack.c.h.b16 %v648
  %v701 = vunpack.c.l.b16 %v649
  %v702 = vunpack.c.h.b16 %v649
  %v703 = vunpack.c.l.b16 %v650
  %v704 = vunpack.c.h.b16 %v650
  %v705 = vunpack.c.l.b16 %v651
  %v706 = vunpack.c.h.b16 %v651
  %v707 = vunpack.c.l.b16 %v652
  %v708 = vunpack.c.h.b16 %v652
  %v709 = vunpack.c.l.b16 %v653
  %v710 = vunpack.c.h.b16 %v653
  %v711 = vunpack.c.l.b16 %v654
  %v712 = vunpack.c.h.b16 %v654
  %v713 = vunpack.c.l.b16 %v655
  %v714 = vunpack.c.h.b16 %v655
  %v715 = vunpack.c.l.b16 %v656
  %v716 = vunpack.c.h.b16 %v656
  %v717 = vpack.c.b16 %v681, %v677
  %v718 = vpack.c.b16 %v682, %v678
  %v719 = vpack.c.b16 %v683, %v679
  %v720 = vpack.c.b16 %v684, %v680
  %v721 = vpack.c.b16 %v689, %v685
  %v722 = vpack.c.b16 %v690, %v686
  %v723 = vpack.c.b16 %v691, %v687
  %v724 = vpack.c.b16 %v692, %v688
  %v725 = vpack.c.b16 %v697, %v693
  %v726 = vpack.c.b16 %v698, %v694
  %v727 = vpack.c.b16 %v699, %v695
  %v728 = vpack.c.b16 %v700, %v696
  %v729 = vpack.c.b16 %v705, %v701
  %v730 = vpack.c.b16 %v706, %v702
  %v731 = vpack.c.b16 %v707, %v703
  %v732 = vpack.c.b16 %v708, %v704
  %v733 = vpack.c.b16 %v713, %v709
  %v734 = vpack.c.b16 %v714, %v710
  %v735 = vpack.c.b16 %v715, %v711
  %v736 = vpack.c.b16 %v716, %v712
  %757 = vmatprep.subr.bf16.mxu0 %v718
  %758 = vmatpush1.bf16.msra.mxu0 %v717
  %759 = vmatprep.subr.bf16.mxu0 %v722
  %760 = vmatpush1.bf16.msra.mxu0 %v721
  %761 = vmatprep.subr.bf16.mxu0 %v726
  %762 = vmatpush1.bf16.msra.mxu0 %v725
  %763 = vmatprep.subr.bf16.mxu0 %v730
  %764 = vmatpush1.bf16.msra.mxu0 %v729
  %765 = vmatprep.subr.bf16.mxu0 %v734
  %766 = vmatpush1.bf16.msra.mxu0 %v733
  %767 = vmatprep.subr.bf16.mxu0 0
  %768 = vmatpush1.bf16.msra.mxu0 0
  %769 = vmatprep.subr.bf16.mxu0 0
  %770 = vmatpush1.bf16.msra.mxu0 0
  %771 = vmatprep.subr.bf16.mxu0 0
  %772 = vmatpush1.bf16.msra.mxu0 0
  %773 = vmatprep.subr.bf16.mxu0 0
  %774 = vmatpush1.bf16.msra.mxu0 0
  %775 = vmatprep.subr.bf16.mxu0 0
  %776 = vmatpush1.bf16.msra.mxu0 0
  %777 = vmatprep.subr.bf16.mxu0 0
  %778 = vmatpush1.bf16.msra.mxu0 0
  %779 = vmatprep.subr.bf16.mxu0 0
  %780 = vmatpush1.bf16.msra.mxu0 0
  %781 = vmatprep.subr.bf16.mxu0 0
  %782 = vmatpush1.bf16.msra.mxu0 0
  %783 = vmatprep.subr.bf16.mxu0 0
  %784 = vmatpush1.bf16.msra.mxu0 0
  %785 = vmatprep.subr.bf16.mxu0 0
  %786 = vmatpush1.bf16.msra.mxu0 0
  %787 = vmatprep.subr.bf16.mxu0 0
  %788 = vmatpush1.bf16.msra.mxu0 0
  %789 = vmatprep.mubr.bf16.mxu0 0
  %790 = vmatmul.mubr.bf16.gmra.mrb[0].mxu0 %v138
  %v791 = vpop.f32.mrb[0].mxu0
  %v792 = vadd.f32 0.0, %v791
  %v793 = vpop.f32.mrb[0].mxu0
  %v794 = vadd.f32 0.0, %v793
  %v795 = vpop.f32.mrb[0].mxu0
  %v796 = vpop.f32.mrb[0].mxu0
  %797 = vdwg.mxu0
  %798 = vmatprep.subr.bf16.mxu0 %v720
  %799 = vmatpush1.bf16.msra.mxu0 %v719
  %800 = vmatprep.subr.bf16.mxu0 %v724
  %801 = vmatpush1.bf16.msra.mxu0 %v723
  %802 = vmatprep.subr.bf16.mxu0 %v728
  %803 = vmatpush1.bf16.msra.mxu0 %v727
  %804 = vmatprep.subr.bf16.mxu0 %v732
  %805 = vmatpush1.bf16.msra.mxu0 %v731
  %806 = vmatprep.subr.bf16.mxu0 %v736
  %807 = vmatpush1.bf16.msra.mxu0 %v735
  %808 = vmatprep.subr.bf16.mxu0 0
  %809 = vmatpush1.bf16.msra.mxu0 0
  %810 = vmatprep.subr.bf16.mxu0 0
  %811 = vmatpush1.bf16.msra.mxu0 0
  %812 = vmatprep.subr.bf16.mxu0 0
  %813 = vmatpush1.bf16.msra.mxu0 0
  %814 = vmatprep.subr.bf16.mxu0 0
  %815 = vmatpush1.bf16.msra.mxu0 0
  %816 = vmatprep.subr.bf16.mxu0 0
  %817 = vmatpush1.bf16.msra.mxu0 0
  %818 = vmatprep.subr.bf16.mxu0 0
  %819 = vmatpush1.bf16.msra.mxu0 0
  %820 = vmatprep.subr.bf16.mxu0 0
  %821 = vmatpush1.bf16.msra.mxu0 0
  %822 = vmatprep.subr.bf16.mxu0 0
  %823 = vmatpush1.bf16.msra.mxu0 0
  %824 = vmatprep.subr.bf16.mxu0 0
  %825 = vmatpush1.bf16.msra.mxu0 0
  %826 = vmatprep.subr.bf16.mxu0 0
  %827 = vmatpush1.bf16.msra.mxu0 0
  %828 = vmatprep.subr.bf16.mxu0 0
  %829 = vmatpush1.bf16.msra.mxu0 0
  %830 = vmatprep.mubr.bf16.mxu0 0
  %831 = vmatmul.mubr.bf16.gmra.mrb[0].mxu0 %v138
  %v832 = vpop.f32.mrb[0].mxu0
  %v833 = vadd.f32 0.0, %v832
  %v834 = vpop.f32.mrb[0].mxu0
  %v835 = vadd.f32 0.0, %v834
  %v836 = vpop.f32.mrb[0].mxu0
  %v837 = vpop.f32.mrb[0].mxu0
  %838 = vdwg.mxu0
  %v839 = vmax.f32 %v632, %v792
  %v840 = vmax.f32 %v633, %v794
  %v841 = vmax.f32 %v634, %v833
  %v842 = vmax.f32 %v635, %v835
  %v843 = vld [vmem:[%s2] sm:$0xff]
  %845 = vset.pattern.permute.xlu0 0
  %846 = vperm.xlu0 %845, %v843
  %v847 = vpop.permute.xlu0 %846
  %v849 = vadd.f32 %v839, %v847
  %v850 = vadd.f32 %v840, %v847
  %v851 = vadd.f32 %v841, %v847
  %v852 = vadd.f32 %v842, %v847
  %v853 = vmax.f32 %v849, 0.0
  %v854 = vmax.f32 %v850, 0.0
  %v855 = vmax.f32 %v851, 0.0
  %v856 = vmax.f32 %v852, 0.0
  %857 = vst [vmem:[%s3] sm:$0xff] %v853
  %858 = vst [vmem:[%s3 + $0x8] sm:$0xff] %v854
  %859 = vst [vmem:[%s3 + $0x10] sm:$0xff] %v855
  %860 = vst [vmem:[%s3 + $0x18] sm:$0xff] %v856
  // Predicated region
  $region14: #{net_forward.3} parent=0 // pred_check
    _
  $region15: #{net_forward.3} parent=0 // pred_check_branch
    %862 = sbr.rel (0) target = $region17
  $region16: #{net_forward.3} parent=0 // pred_region
    _
  $region17: #{net_forward.3} parent=0 // pred_fallthru
    _
  // Predicated region
  $region18: #{net_forward.3} parent=0 // pred_check
    _
  $region19: #{net_forward.3} parent=0 // pred_check_branch
    %864 = sbr.rel (0) target = $region21
  $region20: #{net_forward.3} parent=0 // pred_region
    _
  $region21: #{net_forward.3} parent=0 // pred_fallthru
    _

// kernel: net_forward.4
$region0: #{net_forward.4}
  #allocation0 [shape = 'u32[]', space=smem, size = 0x4, offset = 0x4, fixed_abs, tag = 'smem constant byte address 0x4 - core index']
  #allocation1 [shape = 'u32[144,128]{1,0:T(1,128)}', space=vmem, size = 0x12000, scoped, tag = 'internal scratch']
  %s0 = inlined_call_operand.vmem [shape: bf16[4,152,128], index: 0, kind: input, shape index: {}]
  %s1 = inlined_call_operand.vmem [shape: bf16[16,152], index: 1, kind: input, shape index: {}]
  %s2 = inlined_call_operand.vmem [shape: f32[16,1], index: 2, kind: input, shape index: {}]
  %s3 = inlined_call_operand.vmem [shape: f32[16,128], index: 3, kind: output, shape index: {}]
  %s4 = sld [smem:[#allocation0]]
  $region22: #{net_forward.4} parent=0
    _
  %s6 = ssub.s32 1, %s4
  %s7 = scalar_select 0, %s6, %s4
  // Predicated region
  $region2: #{net_forward.4} parent=0 // pred_check
    _
  $region3: #{net_forward.4} parent=0 // pred_check_branch
    %9 = sbr.rel (0) target = $region5
  $region4: #{net_forward.4} parent=0 // pred_region
    _
  $region5: #{net_forward.4} parent=0 // pred_fallthru
    _
  // Predicated region
  $region6: #{net_forward.4} parent=0 // pred_check
    _
  $region7: #{net_forward.4} parent=0 // pred_check_branch
    %11 = sbr.rel (0) target = $region9
  $region8: #{net_forward.4} parent=0 // pred_region
    _
  $region9: #{net_forward.4} parent=0 // pred_fallthru
    _
  // Predicated region
  $region10: #{net_forward.4} parent=0 // pred_check
    _
  $region11: #{net_forward.4} parent=0 // pred_check_branch
    %13 = sbr.rel (0) target = $region13
  $region12: #{net_forward.4} parent=0 // pred_region
    _
  $region13: #{net_forward.4} parent=0 // pred_fallthru
    _
  %v15 = vld [vmem:[%s1] sm:$0xff]
  %v16 = vld [vmem:[%s1 + $0x8] sm:$0xff]
  %v17 = vld [vmem:[%s0] sm:$0xf]
  %v18 = vld [vmem:[%s0 + $0x4] sm:$0xf]
  %v19 = vld [vmem:[%s0 + $0x8] sm:$0xf]
  %v20 = vld [vmem:[%s0 + $0xc] sm:$0xf]
  %v21 = vld [vmem:[%s0 + $0x10] sm:$0xf]
  %v22 = vld [vmem:[%s0 + $0x14] sm:$0xf]
  %v23 = vld [vmem:[%s0 + $0x18] sm:$0xf]
  %v24 = vld [vmem:[%s0 + $0x1c] sm:$0xf]
  %v25 = vld [vmem:[%s0 + $0x20] sm:$0xf]
  %v26 = vld [vmem:[%s0 + $0x24] sm:$0xf]
  %v27 = vld [vmem:[%s0 + $0x28] sm:$0xf]
  %v28 = vld [vmem:[%s0 + $0x2c] sm:$0xf]
  %v29 = vld [vmem:[%s0 + $0x30] sm:$0xf]
  %v30 = vld [vmem:[%s0 + $0x34] sm:$0xf]
  %v31 = vld [vmem:[%s0 + $0x38] sm:$0xf]
  %v32 = vld [vmem:[%s0 + $0x3c] sm:$0xf]
  %v33 = vld [vmem:[%s0 + $0x40] sm:$0xf]
  %v34 = vld [vmem:[%s0 + $0x44] sm:$0xf]
  %v35 = vld [vmem:[%s0 + $0x48] sm:$0xf]
  %v38 = vunpack.c.l.b16 %v15
  %v39 = vunpack.c.h.b16 %v15
  %v40 = vunpack.c.l.b16 %v16
  %v41 = vunpack.c.h.b16 %v16
  %v42 = vpack.c.b16 %v40, %v38
  %v43 = vpack.c.b16 %v41, %v39
  %v64 = vunpack.c.l.b16 %v17
  %v65 = vunpack.c.l.b16 %v18
  %v66 = vunpack.c.l.b16 %v19
  %v67 = vunpack.c.l.b16 %v20
  %v68 = vunpack.c.l.b16 %v21
  %v69 = vunpack.c.l.b16 %v22
  %v70 = vunpack.c.l.b16 %v23
  %v71 = vunpack.c.l.b16 %v24
  %v72 = vunpack.c.l.b16 %v25
  %v73 = vunpack.c.l.b16 %v26
  %v74 = vunpack.c.l.b16 %v27
  %v75 = vunpack.c.l.b16 %v28
  %v76 = vunpack.c.l.b16 %v29
  %v77 = vunpack.c.l.b16 %v30
  %v78 = vunpack.c.l.b16 %v31
  %v79 = vunpack.c.l.b16 %v32
  %v80 = vunpack.c.l.b16 %v33
  %v81 = vunpack.c.l.b16 %v34
  %v82 = vunpack.c.l.b16 %v35
  %v83 = vpack.c.b16 %v65, %v64
  %v84 = vpack.c.b16 %v67, %v66
  %v85 = vpack.c.b16 %v69, %v68
  %v86 = vpack.c.b16 %v71, %v70
  %v87 = vpack.c.b16 %v73, %v72
  %v88 = vpack.c.b16 %v75, %v74
  %v89 = vpack.c.b16 %v77, %v76
  %v90 = vpack.c.b16 %v79, %v78
  %v91 = vpack.c.b16 %v81, %v80
  %v92 = vpack.c.b16 %v82, %v82
  %vm102 = vcmask 195584
  %v104 = vsel %vm102, %v43, 0
  %vm106 = vcmask 1043456
  %v108 = vsel %vm106, %v92, 0
  %110 = vmatprep.subr.bf16.mxu0 0
  %111 = vmatpush1.bf16.msra.mxu0 %v83
  %112 = vmatprep.subr.bf16.mxu0 0
  %113 = vmatpush1.bf16.msra.mxu0 %v84
  %114 = vmatprep.subr.bf16.mxu0 0
  %115 = vmatpush1.bf16.msra.mxu0 %v85
  %116 = vmatprep.subr.bf16.mxu0 0
  %117 = vmatpush1.bf16.msra.mxu0 %v86
  %118 = vmatprep.subr.bf16.mxu0 0
  %119 = vmatpush1.bf16.msra.mxu0 %v87
  %120 = vmatprep.subr.bf16.mxu0 0
  %121 = vmatpush1.bf16.msra.mxu0 %v88
  %122 = vmatprep.subr.bf16.mxu0 0
  %123 = vmatpush1.bf16.msra.mxu0 %v89
  %124 = vmatprep.subr.bf16.mxu0 0
  %125 = vmatpush1.bf16.msra.mxu0 %v90
  %126 = vmatprep.subr.bf16.mxu0 0
  %127 = vmatpush1.bf16.msra.mxu0 %v91
  %128 = vmatprep.subr.bf16.mxu0 0
  %129 = vmatpush1.bf16.msra.mxu0 %v108
  %130 = vmatprep.subr.bf16.mxu0 0
  %131 = vmatpush1.bf16.msra.mxu0 0
  %132 = vmatprep.subr.bf16.mxu0 0
  %133 = vmatpush1.bf16.msra.mxu0 0
  %134 = vmatprep.subr.bf16.mxu0 0
  %135 = vmatpush1.bf16.msra.mxu0 0
  %136 = vmatprep.subr.bf16.mxu0 0
  %137 = vmatpush1.bf16.msra.mxu0 0
  %138 = vmatprep.subr.bf16.mxu0 0
  %139 = vmatpush1.bf16.msra.mxu0 0
  %140 = vmatprep.subr.bf16.mxu0 0
  %141 = vmatpush1.bf16.msra.mxu0 0
  %142 = vmatprep.mubr.bf16.mxu0 %v104
  %143 = vmatmul.mubr.bf16.gmra.mrb[0].mxu0 %v42
  %v144 = vpop.f32.mrb[0].mxu0
  %v145 = vadd.f32 0.0, %v144
  %v146 = vpop.f32.mrb[0].mxu0
  %v147 = vpop.f32.mrb[0].mxu0
  %v148 = vadd.f32 0.0, %v147
  %v149 = vpop.f32.mrb[0].mxu0
  %150 = vdwg.mxu0
  %s151 = scalar_lea.vmem %s0, 76
  %v152 = vld [vmem:[%s151] sm:$0xf]
  %v153 = vld [vmem:[%s151 + $0x4] sm:$0xf]
  %v154 = vld [vmem:[%s151 + $0x8] sm:$0xf]
  %v155 = vld [vmem:[%s151 + $0xc] sm:$0xf]
  %v156 = vld [vmem:[%s151 + $0x10] sm:$0xf]
  %v157 = vld [vmem:[%s151 + $0x14] sm:$0xf]
  %v158 = vld [vmem:[%s151 + $0x18] sm:$0xf]
  %v159 = vld [vmem:[%s151 + $0x1c] sm:$0xf]
  %v160 = vld [vmem:[%s151 + $0x20] sm:$0xf]
  %v161 = vld [vmem:[%s151 + $0x24] sm:$0xf]
  %v162 = vld [vmem:[%s151 + $0x28] sm:$0xf]
  %v163 = vld [vmem:[%s151 + $0x2c] sm:$0xf]
  %v164 = vld [vmem:[%s151 + $0x30] sm:$0xf]
  %v165 = vld [vmem:[%s151 + $0x34] sm:$0xf]
  %v166 = vld [vmem:[%s151 + $0x38] sm:$0xf]
  %v167 = vld [vmem:[%s151 + $0x3c] sm:$0xf]
  %v168 = vld [vmem:[%s151 + $0x40] sm:$0xf]
  %v169 = vld [vmem:[%s151 + $0x44] sm:$0xf]
  %v170 = vld [vmem:[%s151 + $0x48] sm:$0xf]
  %v190 = vunpack.c.l.b16 %v152
  %v191 = vunpack.c.l.b16 %v153
  %v192 = vunpack.c.l.b16 %v154
  %v193 = vunpack.c.l.b16 %v155
  %v194 = vunpack.c.l.b16 %v156
  %v195 = vunpack.c.l.b16 %v157
  %v196 = vunpack.c.l.b16 %v158
  %v197 = vunpack.c.l.b16 %v159
  %v198 = vunpack.c.l.b16 %v160
  %v199 = vunpack.c.l.b16 %v161
  %v200 = vunpack.c.l.b16 %v162
  %v201 = vunpack.c.l.b16 %v163
  %v202 = vunpack.c.l.b16 %v164
  %v203 = vunpack.c.l.b16 %v165
  %v204 = vunpack.c.l.b16 %v166
  %v205 = vunpack.c.l.b16 %v167
  %v206 = vunpack.c.l.b16 %v168
  %v207 = vunpack.c.l.b16 %v169
  %v208 = vunpack.c.l.b16 %v170
  %v209 = vpack.c.b16 %v191, %v190
  %v210 = vpack.c.b16 %v193, %v192
  %v211 = vpack.c.b16 %v195, %v194
  %v212 = vpack.c.b16 %v197, %v196
  %v213 = vpack.c.b16 %v199, %v198
  %v214 = vpack.c.b16 %v201, %v200
  %v215 = vpack.c.b16 %v203, %v202
  %v216 = vpack.c.b16 %v205, %v204
  %v217 = vpack.c.b16 %v207, %v206
  %v218 = vpack.c.b16 %v208, %v208
  %v229 = vsel %vm106, %v218, 0
  %231 = vmatprep.subr.bf16.mxu0 0
  %232 = vmatpush1.bf16.msra.mxu0 %v209
  %233 = vmatprep.subr.bf16.mxu0 0
  %234 = vmatpush1.bf16.msra.mxu0 %v210
  %235 = vmatprep.subr.bf16.mxu0 0
  %236 = vmatpush1.bf16.msra.mxu0 %v211
  %237 = vmatprep.subr.bf16.mxu0 0
  %238 = vmatpush1.bf16.msra.mxu0 %v212
  %239 = vmatprep.subr.bf16.mxu0 0
  %240 = vmatpush1.bf16.msra.mxu0 %v213
  %241 = vmatprep.subr.bf16.mxu0 0
  %242 = vmatpush1.bf16.msra.mxu0 %v214
  %243 = vmatprep.subr.bf16.mxu0 0
  %244 = vmatpush1.bf16.msra.mxu0 %v215
  %245 = vmatprep.subr.bf16.mxu0 0
  %246 = vmatpush1.bf16.msra.mxu0 %v216
  %247 = vmatprep.subr.bf16.mxu0 0
  %248 = vmatpush1.bf16.msra.mxu0 %v217
  %249 = vmatprep.subr.bf16.mxu0 0
  %250 = vmatpush1.bf16.msra.mxu0 %v229
  %251 = vmatprep.subr.bf16.mxu0 0
  %252 = vmatpush1.bf16.msra.mxu0 0
  %253 = vmatprep.subr.bf16.mxu0 0
  %254 = vmatpush1.bf16.msra.mxu0 0
  %255 = vmatprep.subr.bf16.mxu0 0
  %256 = vmatpush1.bf16.msra.mxu0 0
  %257 = vmatprep.subr.bf16.mxu0 0
  %258 = vmatpush1.bf16.msra.mxu0 0
  %259 = vmatprep.subr.bf16.mxu0 0
  %260 = vmatpush1.bf16.msra.mxu0 0
  %261 = vmatprep.subr.bf16.mxu0 0
  %262 = vmatpush1.bf16.msra.mxu0 0
  %263 = vmatprep.mubr.bf16.mxu0 %v104
  %264 = vmatmul.mubr.bf16.gmra.mrb[0].mxu0 %v42
  %v265 = vpop.f32.mrb[0].mxu0
  %v266 = vadd.f32 0.0, %v265
  %v267 = vpop.f32.mrb[0].mxu0
  %v268 = vpop.f32.mrb[0].mxu0
  %v269 = vadd.f32 0.0, %v268
  %v270 = vpop.f32.mrb[0].mxu0
  %271 = vdwg.mxu0
  %v272 = vmax.f32 %v145, %v266
  %v273 = vmax.f32 %v148, %v269
  %s274 = scalar_lea.vmem %s0, 152
  %v275 = vld [vmem:[%s274] sm:$0xf]
  %v276 = vld [vmem:[%s274 + $0x4] sm:$0xf]
  %v277 = vld [vmem:[%s274 + $0x8] sm:$0xf]
  %v278 = vld [vmem:[%s274 + $0xc] sm:$0xf]
  %v279 = vld [vmem:[%s274 + $0x10] sm:$0xf]
  %v280 = vld [vmem:[%s274 + $0x14] sm:$0xf]
  %v281 = vld [vmem:[%s274 + $0x18] sm:$0xf]
  %v282 = vld [vmem:[%s274 + $0x1c] sm:$0xf]
  %v283 = vld [vmem:[%s274 + $0x20] sm:$0xf]
  %v284 = vld [vmem:[%s274 + $0x24] sm:$0xf]
  %v285 = vld [vmem:[%s274 + $0x28] sm:$0xf]
  %v286 = vld [vmem:[%s274 + $0x2c] sm:$0xf]
  %v287 = vld [vmem:[%s274 + $0x30] sm:$0xf]
  %v288 = vld [vmem:[%s274 + $0x34] sm:$0xf]
  %v289 = vld [vmem:[%s274 + $0x38] sm:$0xf]
  %v290 = vld [vmem:[%s274 + $0x3c] sm:$0xf]
  %v291 = vld [vmem:[%s274 + $0x40] sm:$0xf]
  %v292 = vld [vmem:[%s274 + $0x44] sm:$0xf]
  %v293 = vld [vmem:[%s274 + $0x48] sm:$0xf]
  %v313 = vunpack.c.l.b16 %v275
  %v314 = vunpack.c.l.b16 %v276
  %v315 = vunpack.c.l.b16 %v277
  %v316 = vunpack.c.l.b16 %v278
  %v317 = vunpack.c.l.b16 %v279
  %v318 = vunpack.c.l.b16 %v280
  %v319 = vunpack.c.l.b16 %v281
  %v320 = vunpack.c.l.b16 %v282
  %v321 = vunpack.c.l.b16 %v283
  %v322 = vunpack.c.l.b16 %v284
  %v323 = vunpack.c.l.b16 %v285
  %v324 = vunpack.c.l.b16 %v286
  %v325 = vunpack.c.l.b16 %v287
  %v326 = vunpack.c.l.b16 %v288
  %v327 = vunpack.c.l.b16 %v289
  %v328 = vunpack.c.l.b16 %v290
  %v329 = vunpack.c.l.b16 %v291
  %v330 = vunpack.c.l.b16 %v292
  %v331 = vunpack.c.l.b16 %v293
  %v332 = vpack.c.b16 %v314, %v313
  %v333 = vpack.c.b16 %v316, %v315
  %v334 = vpack.c.b16 %v318, %v317
  %v335 = vpack.c.b16 %v320, %v319
  %v336 = vpack.c.b16 %v322, %v321
  %v337 = vpack.c.b16 %v324, %v323
  %v338 = vpack.c.b16 %v326, %v325
  %v339 = vpack.c.b16 %v328, %v327
  %v340 = vpack.c.b16 %v330, %v329
  %v341 = vpack.c.b16 %v331, %v331
  %v352 = vsel %vm106, %v341, 0
  %354 = vmatprep.subr.bf16.mxu0 0
  %355 = vmatpush1.bf16.msra.mxu0 %v332
  %356 = vmatprep.subr.bf16.mxu0 0
  %357 = vmatpush1.bf16.msra.mxu0 %v333
  %358 = vmatprep.subr.bf16.mxu0 0
  %359 = vmatpush1.bf16.msra.mxu0 %v334
  %360 = vmatprep.subr.bf16.mxu0 0
  %361 = vmatpush1.bf16.msra.mxu0 %v335
  %362 = vmatprep.subr.bf16.mxu0 0
  %363 = vmatpush1.bf16.msra.mxu0 %v336
  %364 = vmatprep.subr.bf16.mxu0 0
  %365 = vmatpush1.bf16.msra.mxu0 %v337
  %366 = vmatprep.subr.bf16.mxu0 0
  %367 = vmatpush1.bf16.msra.mxu0 %v338
  %368 = vmatprep.subr.bf16.mxu0 0
  %369 = vmatpush1.bf16.msra.mxu0 %v339
  %370 = vmatprep.subr.bf16.mxu0 0
  %371 = vmatpush1.bf16.msra.mxu0 %v340
  %372 = vmatprep.subr.bf16.mxu0 0
  %373 = vmatpush1.bf16.msra.mxu0 %v352
  %374 = vmatprep.subr.bf16.mxu0 0
  %375 = vmatpush1.bf16.msra.mxu0 0
  %376 = vmatprep.subr.bf16.mxu0 0
  %377 = vmatpush1.bf16.msra.mxu0 0
  %378 = vmatprep.subr.bf16.mxu0 0
  %379 = vmatpush1.bf16.msra.mxu0 0
  %380 = vmatprep.subr.bf16.mxu0 0
  %381 = vmatpush1.bf16.msra.mxu0 0
  %382 = vmatprep.subr.bf16.mxu0 0
  %383 = vmatpush1.bf16.msra.mxu0 0
  %384 = vmatprep.subr.bf16.mxu0 0
  %385 = vmatpush1.bf16.msra.mxu0 0
  %386 = vmatprep.mubr.bf16.mxu0 %v104
  %387 = vmatmul.mubr.bf16.gmra.mrb[0].mxu0 %v42
  %v388 = vpop.f32.mrb[0].mxu0
  %v389 = vadd.f32 0.0, %v388
  %v390 = vpop.f32.mrb[0].mxu0
  %v391 = vpop.f32.mrb[0].mxu0
  %v392 = vadd.f32 0.0, %v391
  %v393 = vpop.f32.mrb[0].mxu0
  %394 = vdwg.mxu0
  %v395 = vmax.f32 %v272, %v389
  %v396 = vmax.f32 %v273, %v392
  %s397 = scalar_lea.vmem %s0, 228
  %v398 = vld [vmem:[%s397] sm:$0xf]
  %v399 = vld [vmem:[%s397 + $0x4] sm:$0xf]
  %v400 = vld [vmem:[%s397 + $0x8] sm:$0xf]
  %v401 = vld [vmem:[%s397 + $0xc] sm:$0xf]
  %v402 = vld [vmem:[%s397 + $0x10] sm:$0xf]
  %v403 = vld [vmem:[%s397 + $0x14] sm:$0xf]
  %v404 = vld [vmem:[%s397 + $0x18] sm:$0xf]
  %v405 = vld [vmem:[%s397 + $0x1c] sm:$0xf]
  %v406 = vld [vmem:[%s397 + $0x20] sm:$0xf]
  %v407 = vld [vmem:[%s397 + $0x24] sm:$0xf]
  %v408 = vld [vmem:[%s397 + $0x28] sm:$0xf]
  %v409 = vld [vmem:[%s397 + $0x2c] sm:$0xf]
  %v410 = vld [vmem:[%s397 + $0x30] sm:$0xf]
  %v411 = vld [vmem:[%s397 + $0x34] sm:$0xf]
  %v412 = vld [vmem:[%s397 + $0x38] sm:$0xf]
  %v413 = vld [vmem:[%s397 + $0x3c] sm:$0xf]
  %v414 = vld [vmem:[%s397 + $0x40] sm:$0xf]
  %v415 = vld [vmem:[%s397 + $0x44] sm:$0xf]
  %v416 = vld [vmem:[%s397 + $0x48] sm:$0xf]
  %v436 = vunpack.c.l.b16 %v398
  %v437 = vunpack.c.l.b16 %v399
  %v438 = vunpack.c.l.b16 %v400
  %v439 = vunpack.c.l.b16 %v401
  %v440 = vunpack.c.l.b16 %v402
  %v441 = vunpack.c.l.b16 %v403
  %v442 = vunpack.c.l.b16 %v404
  %v443 = vunpack.c.l.b16 %v405
  %v444 = vunpack.c.l.b16 %v406
  %v445 = vunpack.c.l.b16 %v407
  %v446 = vunpack.c.l.b16 %v408
  %v447 = vunpack.c.l.b16 %v409
  %v448 = vunpack.c.l.b16 %v410
  %v449 = vunpack.c.l.b16 %v411
  %v450 = vunpack.c.l.b16 %v412
  %v451 = vunpack.c.l.b16 %v413
  %v452 = vunpack.c.l.b16 %v414
  %v453 = vunpack.c.l.b16 %v415
  %v454 = vunpack.c.l.b16 %v416
  %v455 = vpack.c.b16 %v437, %v436
  %v456 = vpack.c.b16 %v439, %v438
  %v457 = vpack.c.b16 %v441, %v440
  %v458 = vpack.c.b16 %v443, %v442
  %v459 = vpack.c.b16 %v445, %v444
  %v460 = vpack.c.b16 %v447, %v446
  %v461 = vpack.c.b16 %v449, %v448
  %v462 = vpack.c.b16 %v451, %v450
  %v463 = vpack.c.b16 %v453, %v452
  %v464 = vpack.c.b16 %v454, %v454
  %v475 = vsel %vm106, %v464, 0
  %477 = vmatprep.subr.bf16.mxu0 0
  %478 = vmatpush1.bf16.msra.mxu0 %v455
  %479 = vmatprep.subr.bf16.mxu0 0
  %480 = vmatpush1.bf16.msra.mxu0 %v456
  %481 = vmatprep.subr.bf16.mxu0 0
  %482 = vmatpush1.bf16.msra.mxu0 %v457
  %483 = vmatprep.subr.bf16.mxu0 0
  %484 = vmatpush1.bf16.msra.mxu0 %v458
  %485 = vmatprep.subr.bf16.mxu0 0
  %486 = vmatpush1.bf16.msra.mxu0 %v459
  %487 = vmatprep.subr.bf16.mxu0 0
  %488 = vmatpush1.bf16.msra.mxu0 %v460
  %489 = vmatprep.subr.bf16.mxu0 0
  %490 = vmatpush1.bf16.msra.mxu0 %v461
  %491 = vmatprep.subr.bf16.mxu0 0
  %492 = vmatpush1.bf16.msra.mxu0 %v462
  %493 = vmatprep.subr.bf16.mxu0 0
  %494 = vmatpush1.bf16.msra.mxu0 %v463
  %495 = vmatprep.subr.bf16.mxu0 0
  %496 = vmatpush1.bf16.msra.mxu0 %v475
  %497 = vmatprep.subr.bf16.mxu0 0
  %498 = vmatpush1.bf16.msra.mxu0 0
  %499 = vmatprep.subr.bf16.mxu0 0
  %500 = vmatpush1.bf16.msra.mxu0 0
  %501 = vmatprep.subr.bf16.mxu0 0
  %502 = vmatpush1.bf16.msra.mxu0 0
  %503 = vmatprep.subr.bf16.mxu0 0
  %504 = vmatpush1.bf16.msra.mxu0 0
  %505 = vmatprep.subr.bf16.mxu0 0
  %506 = vmatpush1.bf16.msra.mxu0 0
  %507 = vmatprep.subr.bf16.mxu0 0
  %508 = vmatpush1.bf16.msra.mxu0 0
  %509 = vmatprep.mubr.bf16.mxu0 %v104
  %510 = vmatmul.mubr.bf16.gmra.mrb[0].mxu0 %v42
  %v511 = vpop.f32.mrb[0].mxu0
  %v512 = vadd.f32 0.0, %v511
  %v513 = vpop.f32.mrb[0].mxu0
  %v514 = vpop.f32.mrb[0].mxu0
  %v515 = vadd.f32 0.0, %v514
  %v516 = vpop.f32.mrb[0].mxu0
  %517 = vdwg.mxu0
  %v518 = vmax.f32 %v395, %v512
  %v519 = vmax.f32 %v396, %v515
  %v520 = vld [vmem:[%s2] sm:$0xff]
  %v521 = vld [vmem:[%s2 + $0x8] sm:$0xff]
  %523 = vset.pattern.permute.xlu0 0
  %524 = vperm.xlu0 %523, %v520
  %v525 = vpop.permute.xlu0 %524
  %528 = vset.pattern.permute.xlu0 0
  %529 = vperm.xlu0 %528, %v521
  %v530 = vpop.permute.xlu0 %529
  %v532 = vadd.f32 %v518, %v525
  %v533 = vadd.f32 %v519, %v530
  %v534 = vmax.f32 %v532, 0.0
  %v535 = vmax.f32 %v533, 0.0
  %536 = vst [vmem:[%s3] sm:$0xff] %v534
  %537 = vst [vmem:[%s3 + $0x8] sm:$0xff] %v535
  // Predicated region
  $region14: #{net_forward.4} parent=0 // pred_check
    _
  $region15: #{net_forward.4} parent=0 // pred_check_branch
    %539 = sbr.rel (0) target = $region17
  $region16: #{net_forward.4} parent=0 // pred_region
    _
  $region17: #{net_forward.4} parent=0 // pred_fallthru
    _
  // Predicated region
  $region18: #{net_forward.4} parent=0 // pred_check
    _
  $region19: #{net_forward.4} parent=0 // pred_check_branch
    %541 = sbr.rel (0) target = $region21
  $region20: #{net_forward.4} parent=0 // pred_region
    _
  $region21: #{net_forward.4} parent=0 // pred_fallthru
    _

// kernel: net_forward.5
$region0: #{net_forward.5}
  #allocation0 [shape = 'u32[]', space=smem, size = 0x4, offset = 0x4, fixed_abs, tag = 'smem constant byte address 0x4 - core index']
  #allocation1 [shape = 'u32[144,128]{1,0:T(1,128)}', space=vmem, size = 0x12000, scoped, tag = 'internal scratch']
  %s0 = inlined_call_operand.vmem [shape: f32[8,512], index: 0, kind: input, shape index: {}]
  %s1 = inlined_call_operand.vmem [shape: f32[512,128], index: 1, kind: input, shape index: {}]
  %s2 = inlined_call_operand.vmem [shape: f32[1,128], index: 2, kind: input, shape index: {}]
  %s3 = inlined_call_operand.vmem [shape: f32[128,128], index: 3, kind: input, shape index: {}]
  %s4 = inlined_call_operand.vmem [shape: f32[1,128], index: 4, kind: input, shape index: {}]
  %s5 = inlined_call_operand.vmem [shape: f32[128,128], index: 5, kind: input, shape index: {}]
  %s6 = inlined_call_operand.vmem [shape: f32[1,128], index: 6, kind: input, shape index: {}]
  %s7 = inlined_call_operand.vmem [shape: f32[8,128], index: 7, kind: output, shape index: {}]
  %s8 = sld [smem:[#allocation0]]
  $region38: #{net_forward.5} parent=0
    _
  %s10 = ssub.s32 1, %s8
  %s11 = scalar_select 0, %s10, %s8
  // Predicated region
  $region2: #{net_forward.5} parent=0 // pred_check
    _
  $region3: #{net_forward.5} parent=0 // pred_check_branch
    %13 = sbr.rel (0) target = $region5
  $region4: #{net_forward.5} parent=0 // pred_region
    _
  $region5: #{net_forward.5} parent=0 // pred_fallthru
    _
  // Predicated region
  $region6: #{net_forward.5} parent=0 // pred_check
    _
  $region7: #{net_forward.5} parent=0 // pred_check_branch
    %15 = sbr.rel (0) target = $region9
  $region8: #{net_forward.5} parent=0 // pred_region
    _
  $region9: #{net_forward.5} parent=0 // pred_fallthru
    _
  // Predicated region
  $region10: #{net_forward.5} parent=0 // pred_check
    _
  $region11: #{net_forward.5} parent=0 // pred_check_branch
    %17 = sbr.rel (0) target = $region13
  $region12: #{net_forward.5} parent=0 // pred_region
    _
  $region13: #{net_forward.5} parent=0 // pred_fallthru
    _
  // Predicated region
  $region14: #{net_forward.5} parent=0 // pred_check
    _
  $region15: #{net_forward.5} parent=0 // pred_check_branch
    %19 = sbr.rel (0) target = $region17
  $region16: #{net_forward.5} parent=0 // pred_region
    _
  $region17: #{net_forward.5} parent=0 // pred_fallthru
    _
  // Predicated region
  $region18: #{net_forward.5} parent=0 // pred_check
    _
  $region19: #{net_forward.5} parent=0 // pred_check_branch
    %21 = sbr.rel (0) target = $region21
  $region20: #{net_forward.5} parent=0 // pred_region
    _
  $region21: #{net_forward.5} parent=0 // pred_fallthru
    _
  // Predicated region
  $region22: #{net_forward.5} parent=0 // pred_check
    _
  $region23: #{net_forward.5} parent=0 // pred_check_branch
    %23 = sbr.rel (0) target = $region25
  $region24: #{net_forward.5} parent=0 // pred_region
    _
  $region25: #{net_forward.5} parent=0 // pred_fallthru
    _
  // Predicated region
  $region26: #{net_forward.5} parent=0 // pred_check
    _
  $region27: #{net_forward.5} parent=0 // pred_check_branch
    %25 = sbr.rel (0) target = $region29
  $region28: #{net_forward.5} parent=0 // pred_region
    _
  $region29: #{net_forward.5} parent=0 // pred_fallthru
    _
  %v26 = vld [vmem:[%s0] sm:$0xff]
  %v27 = vld [vmem:[%s0 + $0x8] sm:$0xff]
  %v28 = vld [vmem:[%s0 + $0x10] sm:$0xff]
  %v29 = vld [vmem:[%s0 + $0x18] sm:$0xff]
  %v30 = vld [vmem:[%s1] sm:$0xff]
  %v31 = vld [vmem:[%s1 + $0x8] sm:$0xff]
  %v32 = vld [vmem:[%s1 + $0x10] sm:$0xff]
  %v33 = vld [vmem:[%s1 + $0x18] sm:$0xff]
  %v34 = vld [vmem:[%s1 + $0x20] sm:$0xff]
  %v35 = vld [vmem:[%s1 + $0x28] sm:$0xff]
  %v36 = vld [vmem:[%s1 + $0x30] sm:$0xff]
  %v37 = vld [vmem:[%s1 + $0x38] sm:$0xff]
  %v38 = vld [vmem:[%s1 + $0x40] sm:$0xff]
  %v39 = vld [vmem:[%s1 + $0x48] sm:$0xff]
  %v40 = vld [vmem:[%s1 + $0x50] sm:$0xff]
  %v41 = vld [vmem:[%s1 + $0x58] sm:$0xff]
  %v42 = vld [vmem:[%s1 + $0x60] sm:$0xff]
  %v43 = vld [vmem:[%s1 + $0x68] sm:$0xff]
  %v44 = vld [vmem:[%s1 + $0x70] sm:$0xff]
  %v45 = vld [vmem:[%s1 + $0x78] sm:$0xff]
  %v46 = vld [vmem:[%s1 + $0x80] sm:$0xff]
  %v47 = vld [vmem:[%s1 + $0x88] sm:$0xff]
  %v48 = vld [vmem:[%s1 + $0x90] sm:$0xff]
  %v49 = vld [vmem:[%s1 + $0x98] sm:$0xff]
  %v50 = vld [vmem:[%s1 + $0xa0] sm:$0xff]
  %v51 = vld [vmem:[%s1 + $0xa8] sm:$0xff]
  %v52 = vld [vmem:[%s1 + $0xb0] sm:$0xff]
  %v53 = vld [vmem:[%s1 + $0xb8] sm:$0xff]
  %v54 = vld [vmem:[%s1 + $0xc0] sm:$0xff]
  %v55 = vld [vmem:[%s1 + $0xc8] sm:$0xff]
  %v56 = vld [vmem:[%s1 + $0xd0] sm:$0xff]
  %v57 = vld [vmem:[%s1 + $0xd8] sm:$0xff]
  %v58 = vld [vmem:[%s1 + $0xe0] sm:$0xff]
  %v59 = vld [vmem:[%s1 + $0xe8] sm:$0xff]
  %v60 = vld [vmem:[%s1 + $0xf0] sm:$0xff]
  %v61 = vld [vmem:[%s1 + $0xf8] sm:$0xff]
  %v62 = vld [vmem:[%s1 + $0x100] sm:$0xff]
  %v63 = vld [vmem:[%s1 + $0x108] sm:$0xff]
  %v64 = vld [vmem:[%s1 + $0x110] sm:$0xff]
  %v65 = vld [vmem:[%s1 + $0x118] sm:$0xff]
  %v66 = vld [vmem:[%s1 + $0x120] sm:$0xff]
  %v67 = vld [vmem:[%s1 + $0x128] sm:$0xff]
  %v68 = vld [vmem:[%s1 + $0x130] sm:$0xff]
  %v69 = vld [vmem:[%s1 + $0x138] sm:$0xff]
  %v70 = vld [vmem:[%s1 + $0x140] sm:$0xff]
  %v71 = vld [vmem:[%s1 + $0x148] sm:$0xff]
  %v72 = vld [vmem:[%s1 + $0x150] sm:$0xff]
  %v73 = vld [vmem:[%s1 + $0x158] sm:$0xff]
  %v74 = vld [vmem:[%s1 + $0x160] sm:$0xff]
  %v75 = vld [vmem:[%s1 + $0x168] sm:$0xff]
  %v76 = vld [vmem:[%s1 + $0x170] sm:$0xff]
  %v77 = vld [vmem:[%s1 + $0x178] sm:$0xff]
  %v78 = vld [vmem:[%s1 + $0x180] sm:$0xff]
  %v79 = vld [vmem:[%s1 + $0x188] sm:$0xff]
  %v80 = vld [vmem:[%s1 + $0x190] sm:$0xff]
  %v81 = vld [vmem:[%s1 + $0x198] sm:$0xff]
  %v82 = vld [vmem:[%s1 + $0x1a0] sm:$0xff]
  %v83 = vld [vmem:[%s1 + $0x1a8] sm:$0xff]
  %v84 = vld [vmem:[%s1 + $0x1b0] sm:$0xff]
  %v85 = vld [vmem:[%s1 + $0x1b8] sm:$0xff]
  %v86 = vld [vmem:[%s1 + $0x1c0] sm:$0xff]
  %v87 = vld [vmem:[%s1 + $0x1c8] sm:$0xff]
  %v88 = vld [vmem:[%s1 + $0x1d0] sm:$0xff]
  %v89 = vld [vmem:[%s1 + $0x1d8] sm:$0xff]
  %v90 = vld [vmem:[%s1 + $0x1e0] sm:$0xff]
  %v91 = vld [vmem:[%s1 + $0x1e8] sm:$0xff]
  %v92 = vld [vmem:[%s1 + $0x1f0] sm:$0xff]
  %v93 = vld [vmem:[%s1 + $0x1f8] sm:$0xff]
  %v94 = vld [vmem:[%s2] sm:$0x1]
  %v96 = vlaneseq
  %v97 = vshrl.u32 %v96, 7
  %v98 = vsub.s32 0, %v97
  %v99 = vrot.slane %v94, %v98
  %101 = vmatprep.subr.mxu0 0.0
  %102 = vmatpush1.msra.mxu0 %v30
  %103 = vmatprep.subr.mxu0 0.0
  %104 = vmatpush1.msra.mxu0 %v31
  %105 = vmatprep.subr.mxu0 0.0
  %106 = vmatpush1.msra.mxu0 %v32
  %107 = vmatprep.subr.mxu0 0.0
  %108 = vmatpush1.msra.mxu0 %v33
  %109 = vmatprep.subr.mxu0 0.0
  %110 = vmatpush1.msra.mxu0 %v34
  %111 = vmatprep.subr.mxu0 0.0
  %112 = vmatpush1.msra.mxu0 %v35
  %113 = vmatprep.subr.mxu0 0.0
  %114 = vmatpush1.msra.mxu0 %v36
  %115 = vmatprep.subr.mxu0 0.0
  %116 = vmatpush1.msra.mxu0 %v37
  %117 = vmatprep.subr.mxu0 0.0
  %118 = vmatpush1.msra.mxu0 %v38
  %119 = vmatprep.subr.mxu0 0.0
  %120 = vmatpush1.msra.mxu0 %v39
  %121 = vmatprep.subr.mxu0 0.0
  %122 = vmatpush1.msra.mxu0 %v40
  %123 = vmatprep.subr.mxu0 0.0
  %124 = vmatpush1.msra.mxu0 %v41
  %125 = vmatprep.subr.mxu0 0.0
  %126 = vmatpush1.msra.mxu0 %v42
  %127 = vmatprep.subr.mxu0 0.0
  %128 = vmatpush1.msra.mxu0 %v43
  %129 = vmatprep.subr.mxu0 0.0
  %130 = vmatpush1.msra.mxu0 %v44
  %131 = vmatprep.subr.mxu0 0.0
  %132 = vmatpush1.msra.mxu0 %v45
  %133 = vmatprep.subr.mxu0 0.0
  %134 = vmatpush1.msra.mxu0 %v46
  %135 = vmatprep.subr.mxu0 0.0
  %136 = vmatpush1.msra.mxu0 %v47
  %137 = vmatprep.subr.mxu0 0.0
  %138 = vmatpush1.msra.mxu0 %v48
  %139 = vmatprep.subr.mxu0 0.0
  %140 = vmatpush1.msra.mxu0 %v49
  %141 = vmatprep.subr.mxu0 0.0
  %142 = vmatpush1.msra.mxu0 %v50
  %143 = vmatprep.subr.mxu0 0.0
  %144 = vmatpush1.msra.mxu0 %v51
  %145 = vmatprep.subr.mxu0 0.0
  %146 = vmatpush1.msra.mxu0 %v52
  %147 = vmatprep.subr.mxu0 0.0
  %148 = vmatpush1.msra.mxu0 %v53
  %149 = vmatprep.subr.mxu0 0.0
  %150 = vmatpush1.msra.mxu0 %v54
  %151 = vmatprep.subr.mxu0 0.0
  %152 = vmatpush1.msra.mxu0 %v55
  %153 = vmatprep.subr.mxu0 0.0
  %154 = vmatpush1.msra.mxu0 %v56
  %155 = vmatprep.subr.mxu0 0.0
  %156 = vmatpush1.msra.mxu0 %v57
  %157 = vmatprep.subr.mxu0 0.0
  %158 = vmatpush1.msra.mxu0 %v58
  %159 = vmatprep.subr.mxu0 0.0
  %160 = vmatpush1.msra.mxu0 %v59
  %161 = vmatprep.subr.mxu0 0.0
  %162 = vmatpush1.msra.mxu0 %v60
  %163 = vmatprep.subr.mxu0 0.0
  %164 = vmatpush1.msra.mxu0 %v61
  %165 = vmatprep.mubr.f32.mxu0 %v27
  %166 = vmatmul.mubr.f32.gmra.mrb[0].mxu0 %v26
  %v167 = vpop.f32.mrb[0].mxu0
  %v168 = vadd.f32 %v99, %v167
  %v169 = vpop.f32.mrb[0].mxu0
  %170 = vdwg.mxu0
  %171 = vmatprep.subr.mxu0 0.0
  %172 = vmatpush1.msra.mxu0 %v62
  %173 = vmatprep.subr.mxu0 0.0
  %174 = vmatpush1.msra.mxu0 %v63
  %175 = vmatprep.subr.mxu0 0.0
  %176 = vmatpush1.msra.mxu0 %v64
  %177 = vmatprep.subr.mxu0 0.0
  %178 = vmatpush1.msra.mxu0 %v65
  %179 = vmatprep.subr.mxu0 0.0
  %180 = vmatpush1.msra.mxu0 %v66
  %181 = vmatprep.subr.mxu0 0.0
  %182 = vmatpush1.msra.mxu0 %v67
  %183 = vmatprep.subr.mxu0 0.0
  %184 = vmatpush1.msra.mxu0 %v68
  %185 = vmatprep.subr.mxu0 0.0
  %186 = vmatpush1.msra.mxu0 %v69
  %187 = vmatprep.subr.mxu0 0.0
  %188 = vmatpush1.msra.mxu0 %v70
  %189 = vmatprep.subr.mxu0 0.0
  %190 = vmatpush1.msra.mxu0 %v71
  %191 = vmatprep.subr.mxu0 0.0
  %192 = vmatpush1.msra.mxu0 %v72
  %193 = vmatprep.subr.mxu0 0.0
  %194 = vmatpush1.msra.mxu0 %v73
  %195 = vmatprep.subr.mxu0 0.0
  %196 = vmatpush1.msra.mxu0 %v74
  %197 = vmatprep.subr.mxu0 0.0
  %198 = vmatpush1.msra.mxu0 %v75
  %199 = vmatprep.subr.mxu0 0.0
  %200 = vmatpush1.msra.mxu0 %v76
  %201 = vmatprep.subr.mxu0 0.0
  %202 = vmatpush1.msra.mxu0 %v77
  %203 = vmatprep.subr.mxu0 0.0
  %204 = vmatpush1.msra.mxu0 %v78
  %205 = vmatprep.subr.mxu0 0.0
  %206 = vmatpush1.msra.mxu0 %v79
  %207 = vmatprep.subr.mxu0 0.0
  %208 = vmatpush1.msra.mxu0 %v80
  %209 = vmatprep.subr.mxu0 0.0
  %210 = vmatpush1.msra.mxu0 %v81
  %211 = vmatprep.subr.mxu0 0.0
  %212 = vmatpush1.msra.mxu0 %v82
  %213 = vmatprep.subr.mxu0 0.0
  %214 = vmatpush1.msra.mxu0 %v83
  %215 = vmatprep.subr.mxu0 0.0
  %216 = vmatpush1.msra.mxu0 %v84
  %217 = vmatprep.subr.mxu0 0.0
  %218 = vmatpush1.msra.mxu0 %v85
  %219 = vmatprep.subr.mxu0 0.0
  %220 = vmatpush1.msra.mxu0 %v86
  %221 = vmatprep.subr.mxu0 0.0
  %222 = vmatpush1.msra.mxu0 %v87
  %223 = vmatprep.subr.mxu0 0.0
  %224 = vmatpush1.msra.mxu0 %v88
  %225 = vmatprep.subr.mxu0 0.0
  %226 = vmatpush1.msra.mxu0 %v89
  %227 = vmatprep.subr.mxu0 0.0
  %228 = vmatpush1.msra.mxu0 %v90
  %229 = vmatprep.subr.mxu0 0.0
  %230 = vmatpush1.msra.mxu0 %v91
  %231 = vmatprep.subr.mxu0 0.0
  %232 = vmatpush1.msra.mxu0 %v92
  %233 = vmatprep.subr.mxu0 0.0
  %234 = vmatpush1.msra.mxu0 %v93
  %235 = vmatprep.mubr.f32.mxu0 %v29
  %236 = vmatmul.mubr.f32.gmra.mrb[0].mxu0 %v28
  %v237 = vpop.f32.mrb[0].mxu0
  %v238 = vadd.f32 %v168, %v237
  %v239 = vpop.f32.mrb[0].mxu0
  %240 = vdwg.mxu0
  %v241 = vmax.f32 %v238, 0.0
  %v242 = vld [vmem:[%s3] sm:$0xff]
  %v243 = vld [vmem:[%s3 + $0x8] sm:$0xff]
  %v244 = vld [vmem:[%s3 + $0x10] sm:$0xff]
  %v245 = vld [vmem:[%s3 + $0x18] sm:$0xff]
  %v246 = vld [vmem:[%s3 + $0x20] sm:$0xff]
  %v247 = vld [vmem:[%s3 + $0x28] sm:$0xff]
  %v248 = vld [vmem:[%s3 + $0x30] sm:$0xff]
  %v249 = vld [vmem:[%s3 + $0x38] sm:$0xff]
  %v250 = vld [vmem:[%s3 + $0x40] sm:$0xff]
  %v251 = vld [vmem:[%s3 + $0x48] sm:$0xff]
  %v252 = vld [vmem:[%s3 + $0x50] sm:$0xff]
  %v253 = vld [vmem:[%s3 + $0x58] sm:$0xff]
  %v254 = vld [vmem:[%s3 + $0x60] sm:$0xff]
  %v255 = vld [vmem:[%s3 + $0x68] sm:$0xff]
  %v256 = vld [vmem:[%s3 + $0x70] sm:$0xff]
  %v257 = vld [vmem:[%s3 + $0x78] sm:$0xff]
  %v258 = vld [vmem:[%s4] sm:$0x1]
  %v260 = vlaneseq
  %v261 = vshrl.u32 %v260, 7
  %v262 = vsub.s32 0, %v261
  %v263 = vrot.slane %v258, %v262
  %265 = vmatprep.subr.mxu0 0.0
  %266 = vmatpush1.msra.mxu0 %v242
  %267 = vmatprep.subr.mxu0 0.0
  %268 = vmatpush1.msra.mxu0 %v243
  %269 = vmatprep.subr.mxu0 0.0
  %270 = vmatpush1.msra.mxu0 %v244
  %271 = vmatprep.subr.mxu0 0.0
  %272 = vmatpush1.msra.mxu0 %v245
  %273 = vmatprep.subr.mxu0 0.0
  %274 = vmatpush1.msra.mxu0 %v246
  %275 = vmatprep.subr.mxu0 0.0
  %276 = vmatpush1.msra.mxu0 %v247
  %277 = vmatprep.subr.mxu0 0.0
  %278 = vmatpush1.msra.mxu0 %v248
  %279 = vmatprep.subr.mxu0 0.0
  %280 = vmatpush1.msra.mxu0 %v249
  %281 = vmatprep.subr.mxu0 0.0
  %282 = vmatpush1.msra.mxu0 %v250
  %283 = vmatprep.subr.mxu0 0.0
  %284 = vmatpush1.msra.mxu0 %v251
  %285 = vmatprep.subr.mxu0 0.0
  %286 = vmatpush1.msra.mxu0 %v252
  %287 = vmatprep.subr.mxu0 0.0
  %288 = vmatpush1.msra.mxu0 %v253
  %289 = vmatprep.subr.mxu0 0.0
  %290 = vmatpush1.msra.mxu0 %v254
  %291 = vmatprep.subr.mxu0 0.0
  %292 = vmatpush1.msra.mxu0 %v255
  %293 = vmatprep.subr.mxu0 0.0
  %294 = vmatpush1.msra.mxu0 %v256
  %295 = vmatprep.subr.mxu0 0.0
  %296 = vmatpush1.msra.mxu0 %v257
  %297 = vmatprep.subr.mxu0 0.0
  %298 = vmatpush1.msra.mxu0 0.0
  %299 = vmatprep.subr.mxu0 0.0
  %300 = vmatpush1.msra.mxu0 0.0
  %301 = vmatprep.subr.mxu0 0.0
  %302 = vmatpush1.msra.mxu0 0.0
  %303 = vmatprep.subr.mxu0 0.0
  %304 = vmatpush1.msra.mxu0 0.0
  %305 = vmatprep.subr.mxu0 0.0
  %306 = vmatpush1.msra.mxu0 0.0
  %307 = vmatprep.subr.mxu0 0.0
  %308 = vmatpush1.msra.mxu0 0.0
  %309 = vmatprep.subr.mxu0 0.0
  %310 = vmatpush1.msra.mxu0 0.0
  %311 = vmatprep.subr.mxu0 0.0
  %312 = vmatpush1.msra.mxu0 0.0
  %313 = vmatprep.subr.mxu0 0.0
  %314 = vmatpush1.msra.mxu0 0.0
  %315 = vmatprep.subr.mxu0 0.0
  %316 = vmatpush1.msra.mxu0 0.0
  %317 = vmatprep.subr.mxu0 0.0
  %318 = vmatpush1.msra.mxu0 0.0
  %319 = vmatprep.subr.mxu0 0.0
  %320 = vmatpush1.msra.mxu0 0.0
  %321 = vmatprep.subr.mxu0 0.0
  %322 = vmatpush1.msra.mxu0 0.0
  %323 = vmatprep.subr.mxu0 0.0
  %324 = vmatpush1.msra.mxu0 0.0
  %325 = vmatprep.subr.mxu0 0.0
  %326 = vmatpush1.msra.mxu0 0.0
  %327 = vmatprep.subr.mxu0 0.0
  %328 = vmatpush1.msra.mxu0 0.0
  %329 = vmatprep.mubr.f32.mxu0 0.0
  %330 = vmatmul.mubr.f32.gmra.mrb[0].mxu0 %v241
  %v331 = vpop.f32.mrb[0].mxu0
  %v332 = vadd.f32 %v263, %v331
  %v333 = vpop.f32.mrb[0].mxu0
  %334 = vdwg.mxu0
  %v335 = vmax.f32 %v332, 0.0
  %v336 = vld [vmem:[%s5] sm:$0xff]
  %v337 = vld [vmem:[%s5 + $0x8] sm:$0xff]
  %v338 = vld [vmem:[%s5 + $0x10] sm:$0xff]
  %v339 = vld [vmem:[%s5 + $0x18] sm:$0xff]
  %v340 = vld [vmem:[%s5 + $0x20] sm:$0xff]
  %v341 = vld [vmem:[%s5 + $0x28] sm:$0xff]
  %v342 = vld [vmem:[%s5 + $0x30] sm:$0xff]
  %v343 = vld [vmem:[%s5 + $0x38] sm:$0xff]
  %v344 = vld [vmem:[%s5 + $0x40] sm:$0xff]
  %v345 = vld [vmem:[%s5 + $0x48] sm:$0xff]
  %v346 = vld [vmem:[%s5 + $0x50] sm:$0xff]
  %v347 = vld [vmem:[%s5 + $0x58] sm:$0xff]
  %v348 = vld [vmem:[%s5 + $0x60] sm:$0xff]
  %v349 = vld [vmem:[%s5 + $0x68] sm:$0xff]
  %v350 = vld [vmem:[%s5 + $0x70] sm:$0xff]
  %v351 = vld [vmem:[%s5 + $0x78] sm:$0xff]
  %v352 = vld [vmem:[%s6] sm:$0x1]
  %v354 = vlaneseq
  %v355 = vshrl.u32 %v354, 7
  %v356 = vsub.s32 0, %v355
  %v357 = vrot.slane %v352, %v356
  %359 = vmatprep.subr.mxu0 0.0
  %360 = vmatpush1.msra.mxu0 %v336
  %361 = vmatprep.subr.mxu0 0.0
  %362 = vmatpush1.msra.mxu0 %v337
  %363 = vmatprep.subr.mxu0 0.0
  %364 = vmatpush1.msra.mxu0 %v338
  %365 = vmatprep.subr.mxu0 0.0
  %366 = vmatpush1.msra.mxu0 %v339
  %367 = vmatprep.subr.mxu0 0.0
  %368 = vmatpush1.msra.mxu0 %v340
  %369 = vmatprep.subr.mxu0 0.0
  %370 = vmatpush1.msra.mxu0 %v341
  %371 = vmatprep.subr.mxu0 0.0
  %372 = vmatpush1.msra.mxu0 %v342
  %373 = vmatprep.subr.mxu0 0.0
  %374 = vmatpush1.msra.mxu0 %v343
  %375 = vmatprep.subr.mxu0 0.0
  %376 = vmatpush1.msra.mxu0 %v344
  %377 = vmatprep.subr.mxu0 0.0
  %378 = vmatpush1.msra.mxu0 %v345
  %379 = vmatprep.subr.mxu0 0.0
  %380 = vmatpush1.msra.mxu0 %v346
  %381 = vmatprep.subr.mxu0 0.0
  %382 = vmatpush1.msra.mxu0 %v347
  %383 = vmatprep.subr.mxu0 0.0
  %384 = vmatpush1.msra.mxu0 %v348
  %385 = vmatprep.subr.mxu0 0.0
  %386 = vmatpush1.msra.mxu0 %v349
  %387 = vmatprep.subr.mxu0 0.0
  %388 = vmatpush1.msra.mxu0 %v350
  %389 = vmatprep.subr.mxu0 0.0
  %390 = vmatpush1.msra.mxu0 %v351
  %391 = vmatprep.subr.mxu0 0.0
  %392 = vmatpush1.msra.mxu0 0.0
  %393 = vmatprep.subr.mxu0 0.0
  %394 = vmatpush1.msra.mxu0 0.0
  %395 = vmatprep.subr.mxu0 0.0
  %396 = vmatpush1.msra.mxu0 0.0
  %397 = vmatprep.subr.mxu0 0.0
  %398 = vmatpush1.msra.mxu0 0.0
  %399 = vmatprep.subr.mxu0 0.0
  %400 = vmatpush1.msra.mxu0 0.0
  %401 = vmatprep.subr.mxu0 0.0
  %402 = vmatpush1.msra.mxu0 0.0
  %403 = vmatprep.subr.mxu0 0.0
  %404 = vmatpush1.msra.mxu0 0.0
  %405 = vmatprep.subr.mxu0 0.0
  %406 = vmatpush1.msra.mxu0 0.0
  %407 = vmatprep.subr.mxu0 0.0
  %408 = vmatpush1.msra.mxu0 0.0
  %409 = vmatprep.subr.mxu0 0.0
  %410 = vmatpush1.msra.mxu0 0.0
  %411 = vmatprep.subr.mxu0 0.0
  %412 = vmatpush1.msra.mxu0 0.0
  %413 = vmatprep.subr.mxu0 0.0
  %414 = vmatpush1.msra.mxu0 0.0
  %415 = vmatprep.subr.mxu0 0.0
  %416 = vmatpush1.msra.mxu0 0.0
  %417 = vmatprep.subr.mxu0 0.0
  %418 = vmatpush1.msra.mxu0 0.0
  %419 = vmatprep.subr.mxu0 0.0
  %420 = vmatpush1.msra.mxu0 0.0
  %421 = vmatprep.subr.mxu0 0.0
  %422 = vmatpush1.msra.mxu0 0.0
  %423 = vmatprep.mubr.f32.mxu0 0.0
  %424 = vmatmul.mubr.f32.gmra.mrb[0].mxu0 %v335
  %v425 = vpop.f32.mrb[0].mxu0
  %v426 = vadd.f32 %v357, %v425
  %v427 = vpop.f32.mrb[0].mxu0
  %428 = vdwg.mxu0
  %429 = vst [vmem:[%s7] sm:$0xff] %v426
  // Predicated region
  $region30: #{net_forward.5} parent=0 // pred_check
    _
  $region31: #{net_forward.5} parent=0 // pred_check_branch
    %431 = sbr.rel (0) target = $region33
  $region32: #{net_forward.5} parent=0 // pred_region
    _
  $region33: #{net_forward.5} parent=0 // pred_fallthru
    _
  // Predicated region
  $region34: #{net_forward.5} parent=0 // pred_check
    _
  $region35: #{net_forward.5} parent=0 // pred_check_branch
    %433 = sbr.rel (0) target = $region37
  $region36: #{net_forward.5} parent=0 // pred_region
    _
  $region37: #{net_forward.5} parent=0 // pred_fallthru
    _

</llo_original>
